<compile_context>
chip_gen: v7x
topology: tpu7x:2x2x1
jax: 0.10.0
libtpu: 0.0.40
codegen_flags: <defaults>
</compile_context>

<pallas_src>
import numpy as np

import jax
import jax.numpy as jnp
from jax.experimental import pallas as pl
from jax.experimental.pallas import tpu as pltpu


# ----------------------------- host-side constants --------------------------

def bilinear_matrix(n_in, n_out):
    """1-D interpolation matrix for align_corners=True bilinear resize."""
    A = np.zeros((n_out, n_in), np.float32)
    if n_out == 1 or n_in == 1:
        A[:, 0] = 1.0
        return A
    scale = (n_in - 1) / (n_out - 1)
    for o in range(n_out):
        src = o * scale
        i0 = min(int(np.floor(src)), n_in - 1)
        i1 = min(i0 + 1, n_in - 1)
        w = src - i0
        A[o, i0] += 1.0 - w
        A[o, i1] += w
    return A


def make_tap_masks(H, W):
    """masks[dy*3+dx, h*W+w] = 1 iff conv tap (dy,dx) reads inside the image."""
    h = np.arange(H)[:, None]
    w = np.arange(W)[None, :]
    masks = np.zeros((9, H * W), np.float32)
    for dy in range(3):
        for dx in range(3):
            valid = ((h + dy - 1 >= 0) & (h + dy - 1 < H) &
                     (w + dx - 1 >= 0) & (w + dx - 1 < W))
            masks[dy * 3 + dx] = valid.reshape(-1).astype(np.float32)
    return masks


# ------------------------------- fused kernel -------------------------------

def _make_fused_kernel(H, W):
    S = H * W
    # lane offset read by tap (dy, dx) in the flattened (C, H*W) layout
    offs = [oy * W + ox for oy in (-1, 0, 1) for ox in (-1, 0, 1)]

    def kernel(x0_ref, skip_ref, kt_ref, mask_ref,
               w1_ref, b1_ref, w2_ref, b2_ref, w3_ref, b3_ref, o_ref):
        # ---- bilinear x2 upsample (align_corners=True): one Kron matmul ----
        # (C0, Hi*Wi)@(Hi*Wi, Ho*Wo) -> (C0, S), bf16 operands, f32 accumulate
        up = jnp.dot(x0_ref[0], kt_ref[...],
                     preferred_element_type=jnp.float32)
        # ---- channel concat: [upsampled, skip] along the sublane axis -------
        x = jnp.concatenate([up.astype(jnp.bfloat16), skip_ref[0]], axis=0)
        masks = mask_ref[...]                                     # (9, S) f32

        y = None
        # ---- 3 x (conv3x3 pad=1 + ReLU): 9 shifted dense-tap matmuls each ---
        for w_ref, b_ref in ((w1_ref, b1_ref), (w2_ref, b2_ref),
                             (w3_ref, b3_ref)):
            w = w_ref[...]                                        # (9,Cout,Cin)
            cout = w.shape[1]
            acc = jnp.broadcast_to(b_ref[...], (cout, S))         # bias init
            for k, d in enumerate(offs):
                if d == 0:
                    xs = x
                else:
                    # xs[:, s] = x[:, s + d]; wrapped lanes are masked below
                    xs = jnp.concatenate([x[:, d:], x[:, :d]], axis=1)
                part = jnp.dot(w[k], xs,
                               preferred_element_type=jnp.float32)
                if d == 0:
                    acc = acc + part
                else:
                    acc = acc + part * masks[k:k + 1, :]
            y = jnp.maximum(acc, 0.0)                             # f32
            x = y.astype(jnp.bfloat16)                            # next layer
        o_ref[0] = y                                              # (Cout,S) f32

    return kernel


def _unet_up_fused(inputs0, skip, kt, masks, w_taps, b_cols):
    """Fused forward: upsample + concat + 3x(conv3x3+ReLU) in one pallas_call."""
    N, C0, Hi, Wi = inputs0.shape
    _, C1, H, W = skip.shape
    S = H * W
    cout = w_taps[-1].shape[1]

    x0 = inputs0.astype(jnp.bfloat16).reshape(N, C0, Hi * Wi)     # free reshape
    sk = skip.astype(jnp.bfloat16).reshape(N, C1, S)              # free reshape
    w1, w2, w3 = w_taps
    b1, b2, b3 = b_cols

    out = pl.pallas_call(
        _make_fused_kernel(H, W),
        out_shape=jax.ShapeDtypeStruct((N, cout, S), jnp.float32),
        grid=(N,),
        in_specs=[
            pl.BlockSpec((1, C0, Hi * Wi), lambda n: (n, 0, 0)),
            pl.BlockSpec((1, C1, S), lambda n: (n, 0, 0)),
            pl.BlockSpec((Hi * Wi, S), lambda n: (0, 0)),
            pl.BlockSpec((9, S), lambda n: (0, 0)),
            pl.BlockSpec(w1.shape, lambda n: (0, 0, 0)),
            pl.BlockSpec(b1.shape, lambda n: (0, 0)),
            pl.BlockSpec(w2.shape, lambda n: (0, 0, 0)),
            pl.BlockSpec(b2.shape, lambda n: (0, 0)),
            pl.BlockSpec(w3.shape, lambda n: (0, 0, 0)),
            pl.BlockSpec(b3.shape, lambda n: (0, 0)),
        ],
        out_specs=pl.BlockSpec((1, cout, S), lambda n: (n, 0, 0)),
        compiler_params=pltpu.CompilerParams(
            dimension_semantics=("parallel",)),
    )(x0, sk, kt, masks, w1, b1, w2, b2, w3, b3)
    return out.reshape(N, cout, H, W)                             # free reshape


# ------------------------------- module wrapper ------------------------------

class UnetUpPallas:
    """unetUp(in_size, out_size, is_deconv=False) with deterministic params."""

    def __init__(self, in_size, out_size, key, n=3):
        keys = jax.random.split(key, 2 * n)
        self.params = []                    # HWIO f32 weights (reference layout)
        c_in = in_size
        for i in range(n):                  # unetConv2: n=3 conv+relu blocks
            w = jax.random.normal(keys[2 * i], (3, 3, c_in, out_size),
                                  jnp.float32) * 0.1
            b = jax.random.normal(keys[2 * i + 1], (out_size,),
                                  jnp.float32) * 0.1
            self.params.append((w, b))
            c_in = out_size

        # hoisted kernel-side constants: dense per-tap weights + bias columns
        self.w_taps, self.b_cols = [], []
        for w, b in self.params:
            cin, cout = w.shape[2], w.shape[3]
            taps = np.transpose(np.asarray(w), (0, 1, 3, 2)).reshape(9, cout, cin)
            self.w_taps.append(jnp.asarray(taps, jnp.bfloat16))
            self.b_cols.append(jnp.asarray(np.asarray(b).reshape(cout, 1),
                                           jnp.float32))

        self._spatial_cache = {}
        self._fwd = jax.jit(_unet_up_fused)

    def spatial_constants(self, Hi, Wi):
        key = (Hi, Wi)
        if key not in self._spatial_cache:
            Ho, Wo = 2 * Hi, 2 * Wi
            A_h = bilinear_matrix(Hi, Ho)
            A_w = bilinear_matrix(Wi, Wo)
            kt = jnp.asarray(np.kron(A_h, A_w).T, jnp.bfloat16)   # (Hi*Wi, Ho*Wo)
            masks = jnp.asarray(make_tap_masks(Ho, Wo))           # (9, Ho*Wo)
            self._spatial_cache[key] = (kt, masks)
        return self._spatial_cache[key]

    def __call__(self, inputs0, *skips):
        _, _, Hi, Wi = inputs0.shape
        kt, masks = self.spatial_constants(Hi, Wi)
        skip = skips[0] if len(skips) == 1 else jnp.concatenate(skips, axis=1)
        return self._fwd(inputs0, skip, kt, masks, self.w_taps, self.b_cols)


# ------------------------------ pure-JAX reference ---------------------------

def reference(inputs0, skip, params, kt_bf16):
    """Reference that mimics the kernel's bf16-operand / f32-accumulate math."""
    N, C0, Hi, Wi = inputs0.shape
    _, C1, H, W = skip.shape
    q = lambda a: a.astype(jnp.bfloat16).astype(jnp.float32)
    x0 = q(inputs0).reshape(N, C0, Hi * Wi)
    up = jnp.einsum('ncs,st->nct', x0, q(kt_bf16),
                    precision=jax.lax.Precision.HIGHEST)
    x = jnp.concatenate([q(up).reshape(N, C0, H, W), q(skip)], axis=1)
    x = jnp.transpose(x, (0, 2, 3, 1))                            # NHWC
    y = None
    for w, b in params:
        y = jax.lax.conv_general_dilated(
            x, q(w), (1, 1), 'SAME',
            dimension_numbers=('NHWC', 'HWIO', 'NHWC'),
            precision=jax.lax.Precision.HIGHEST) + b
        y = jnp.maximum(y, 0.0)
        x = q(y)
    return jnp.transpose(y, (0, 3, 1, 2))


# ----------------------------------- main ------------------------------------

if __name__ == "__main__":
    key = jax.random.PRNGKey(0)
    k0, k1, kp = jax.random.split(key, 3)

    N, C0, Hi, Wi = 2, 4, 8, 8          # inputs0 (to be upsampled x2)
    C1 = 4                              # skip connection channels
    in_size, out_size = C0 + C1, 4      # unetUp(in_size=8, out_size=4)

    inputs0 = jax.random.normal(k0, (N, C0, Hi, Wi), jnp.float32)
    skip = jax.random.normal(k1, (N, C1, 2 * Hi, 2 * Wi), jnp.float32)

    model = UnetUpPallas(in_size, out_size, kp)
    out = jax.block_until_ready(model(inputs0, skip))
    assert out.shape == (N, out_size, 2 * Hi, 2 * Wi), out.shape

    kt_bf, _ = model.spatial_constants(Hi, Wi)
    ref = jax.block_until_ready(reference(inputs0, skip, model.params, kt_bf))
    max_diff = float(jnp.max(jnp.abs(out - ref)))
    # reference mimics the bf16 operand quantization, so the gap is only MXU vs
    # XLA f32 accumulation order (plus rare 1-ulp bf16 rounding flips).
    assert max_diff < 1e-2, f"mismatch vs reference: {max_diff}"

    print("KERNEL_OK")
</pallas_src>

<mosaic_0001>
module attributes {stable_mosaic.version = 11 : i64} {
  func.func @kernel(%arg0: i32, %arg1: memref<1x4x64xbf16, #tpu.memory_space<vmem>>, %arg2: memref<1x4x256xbf16, #tpu.memory_space<vmem>>, %arg3: memref<64x256xbf16, #tpu.memory_space<vmem>>, %arg4: memref<9x256xf32, #tpu.memory_space<vmem>>, %arg5: memref<9x4x8xbf16, #tpu.memory_space<vmem>>, %arg6: memref<4x1xf32, #tpu.memory_space<vmem>>, %arg7: memref<9x4x4xbf16, #tpu.memory_space<vmem>>, %arg8: memref<4x1xf32, #tpu.memory_space<vmem>>, %arg9: memref<9x4x4xbf16, #tpu.memory_space<vmem>>, %arg10: memref<4x1xf32, #tpu.memory_space<vmem>>, %arg11: memref<1x4x256xf32, #tpu.memory_space<vmem>>) attributes {dimension_semantics = [#tpu.dimension_semantics<parallel>], iteration_bounds = array<i64: 2>, scalar_prefetch = 0 : i64, scratch_operands = 0 : i64, tpu.core_type = #tpu.core_type<tc>, window_params = [{transform_indices = @transform_0, window_bounds = array<i64: 1, 4, 64>}, {transform_indices = @transform_1, window_bounds = array<i64: 1, 4, 256>}, {pipeline_mode = #tpu.pipeline_mode<synchronous>, transform_indices = @transform_2, window_bounds = array<i64: 64, 256>}, {pipeline_mode = #tpu.pipeline_mode<synchronous>, transform_indices = @transform_3, window_bounds = array<i64: 9, 256>}, {pipeline_mode = #tpu.pipeline_mode<synchronous>, transform_indices = @transform_4, window_bounds = array<i64: 9, 4, 8>}, {pipeline_mode = #tpu.pipeline_mode<synchronous>, transform_indices = @transform_5, window_bounds = array<i64: 4, 1>}, {pipeline_mode = #tpu.pipeline_mode<synchronous>, transform_indices = @transform_6, window_bounds = array<i64: 9, 4, 4>}, {pipeline_mode = #tpu.pipeline_mode<synchronous>, transform_indices = @transform_7, window_bounds = array<i64: 4, 1>}, {pipeline_mode = #tpu.pipeline_mode<synchronous>, transform_indices = @transform_8, window_bounds = array<i64: 9, 4, 4>}, {pipeline_mode = #tpu.pipeline_mode<synchronous>, transform_indices = @transform_9, window_bounds = array<i64: 4, 1>}, {transform_indices = @transform_10, window_bounds = array<i64: 1, 4, 256>}]} {
    %c0 = arith.constant 0 : index
    %c0_0 = arith.constant 0 : index
    %c0_1 = arith.constant 0 : index
    %0 = vector.load %arg1[%c0, %c0_0, %c0_1] : memref<1x4x64xbf16, #tpu.memory_space<vmem>>, vector<1x4x64xbf16>
    %1 = vector.shape_cast %0 : vector<1x4x64xbf16> to vector<4x64xbf16>
    %c0_2 = arith.constant 0 : index
    %c0_3 = arith.constant 0 : index
    %2 = vector.load %arg3[%c0_2, %c0_3] : memref<64x256xbf16, #tpu.memory_space<vmem>>, vector<64x256xbf16>
    %cst = arith.constant dense<0.000000e+00> : vector<4x256xf32>
    %3 = tpu.matmul %1, %2, %cst {dimension_numbers = #tpu.dot_dimension_numbers<[1], [0], [0], [1], [0, 0, 1, 1], [], []>} : vector<4x64xbf16>, vector<64x256xbf16>, vector<4x256xf32> -> vector<4x256xf32>
    %4 = arith.truncf %3 : vector<4x256xf32> to vector<4x256xbf16>
    %c0_4 = arith.constant 0 : index
    %c0_5 = arith.constant 0 : index
    %c0_6 = arith.constant 0 : index
    %5 = vector.load %arg2[%c0_4, %c0_5, %c0_6] : memref<1x4x256xbf16, #tpu.memory_space<vmem>>, vector<1x4x256xbf16>
    %6 = vector.shape_cast %5 : vector<1x4x256xbf16> to vector<4x256xbf16>
    %7 = tpu.concatenate %4, %6 in 0 : vector<4x256xbf16>, vector<4x256xbf16> -> vector<8x256xbf16>
    %c0_7 = arith.constant 0 : index
    %c0_8 = arith.constant 0 : index
    %8 = vector.load %arg4[%c0_7, %c0_8] : memref<9x256xf32, #tpu.memory_space<vmem>>, vector<9x256xf32>
    %c0_9 = arith.constant 0 : index
    %c0_10 = arith.constant 0 : index
    %c0_11 = arith.constant 0 : index
    %9 = vector.load %arg5[%c0_9, %c0_10, %c0_11] : memref<9x4x8xbf16, #tpu.memory_space<vmem>>, vector<9x4x8xbf16>
    %c0_12 = arith.constant 0 : index
    %c0_13 = arith.constant 0 : index
    %10 = vector.load %arg6[%c0_12, %c0_13] : memref<4x1xf32, #tpu.memory_space<vmem>>, vector<4x1xf32>
    %11 = vector.shape_cast %10 : vector<4x1xf32> to vector<4x1xf32>
    %12 = vector.broadcast %11 : vector<4x1xf32> to vector<4x256xf32>
    %13 = vector.extract_strided_slice %7 {offsets = [0, 239], sizes = [8, 17], strides = [1, 1]} : vector<8x256xbf16> to vector<8x17xbf16>
    %14 = vector.extract_strided_slice %7 {offsets = [0, 0], sizes = [8, 239], strides = [1, 1]} : vector<8x256xbf16> to vector<8x239xbf16>
    %15 = tpu.concatenate %13, %14 in 1 : vector<8x17xbf16>, vector<8x239xbf16> -> vector<8x256xbf16>
    %16 = vector.extract_strided_slice %9 {offsets = [0, 0, 0], sizes = [1, 4, 8], strides = [1, 1, 1]} : vector<9x4x8xbf16> to vector<1x4x8xbf16>
    %17 = vector.shape_cast %16 : vector<1x4x8xbf16> to vector<4x8xbf16>
    %cst_14 = arith.constant dense<0.000000e+00> : vector<4x256xf32>
    %18 = tpu.matmul %17, %15, %cst_14 {dimension_numbers = #tpu.dot_dimension_numbers<[1], [0], [0], [1], [0, 0, 1, 1], [], []>} : vector<4x8xbf16>, vector<8x256xbf16>, vector<4x256xf32> -> vector<4x256xf32>
    %19 = vector.extract_strided_slice %8 {offsets = [0, 0], sizes = [1, 256], strides = [1, 1]} : vector<9x256xf32> to vector<1x256xf32>
    %20 = vector.broadcast %19 : vector<1x256xf32> to vector<4x256xf32>
    %21 = arith.mulf %18, %20 : vector<4x256xf32>
    %22 = arith.addf %12, %21 : vector<4x256xf32>
    %23 = vector.extract_strided_slice %7 {offsets = [0, 240], sizes = [8, 16], strides = [1, 1]} : vector<8x256xbf16> to vector<8x16xbf16>
    %24 = vector.extract_strided_slice %7 {offsets = [0, 0], sizes = [8, 240], strides = [1, 1]} : vector<8x256xbf16> to vector<8x240xbf16>
    %25 = tpu.concatenate %23, %24 in 1 : vector<8x16xbf16>, vector<8x240xbf16> -> vector<8x256xbf16>
    %26 = vector.extract_strided_slice %9 {offsets = [1, 0, 0], sizes = [1, 4, 8], strides = [1, 1, 1]} : vector<9x4x8xbf16> to vector<1x4x8xbf16>
    %27 = vector.shape_cast %26 : vector<1x4x8xbf16> to vector<4x8xbf16>
    %cst_15 = arith.constant dense<0.000000e+00> : vector<4x256xf32>
    %28 = tpu.matmul %27, %25, %cst_15 {dimension_numbers = #tpu.dot_dimension_numbers<[1], [0], [0], [1], [0, 0, 1, 1], [], []>} : vector<4x8xbf16>, vector<8x256xbf16>, vector<4x256xf32> -> vector<4x256xf32>
    %29 = vector.extract_strided_slice %8 {offsets = [1, 0], sizes = [1, 256], strides = [1, 1]} : vector<9x256xf32> to vector<1x256xf32>
    %30 = vector.broadcast %29 : vector<1x256xf32> to vector<4x256xf32>
    %31 = arith.mulf %28, %30 : vector<4x256xf32>
    %32 = arith.addf %22, %31 : vector<4x256xf32>
    %33 = vector.extract_strided_slice %7 {offsets = [0, 241], sizes = [8, 15], strides = [1, 1]} : vector<8x256xbf16> to vector<8x15xbf16>
    %34 = vector.extract_strided_slice %7 {offsets = [0, 0], sizes = [8, 241], strides = [1, 1]} : vector<8x256xbf16> to vector<8x241xbf16>
    %35 = tpu.concatenate %33, %34 in 1 : vector<8x15xbf16>, vector<8x241xbf16> -> vector<8x256xbf16>
    %36 = vector.extract_strided_slice %9 {offsets = [2, 0, 0], sizes = [1, 4, 8], strides = [1, 1, 1]} : vector<9x4x8xbf16> to vector<1x4x8xbf16>
    %37 = vector.shape_cast %36 : vector<1x4x8xbf16> to vector<4x8xbf16>
    %cst_16 = arith.constant dense<0.000000e+00> : vector<4x256xf32>
    %38 = tpu.matmul %37, %35, %cst_16 {dimension_numbers = #tpu.dot_dimension_numbers<[1], [0], [0], [1], [0, 0, 1, 1], [], []>} : vector<4x8xbf16>, vector<8x256xbf16>, vector<4x256xf32> -> vector<4x256xf32>
    %39 = vector.extract_strided_slice %8 {offsets = [2, 0], sizes = [1, 256], strides = [1, 1]} : vector<9x256xf32> to vector<1x256xf32>
    %40 = vector.broadcast %39 : vector<1x256xf32> to vector<4x256xf32>
    %41 = arith.mulf %38, %40 : vector<4x256xf32>
    %42 = arith.addf %32, %41 : vector<4x256xf32>
    %43 = vector.extract_strided_slice %7 {offsets = [0, 255], sizes = [8, 1], strides = [1, 1]} : vector<8x256xbf16> to vector<8x1xbf16>
    %44 = vector.extract_strided_slice %7 {offsets = [0, 0], sizes = [8, 255], strides = [1, 1]} : vector<8x256xbf16> to vector<8x255xbf16>
    %45 = tpu.concatenate %43, %44 in 1 : vector<8x1xbf16>, vector<8x255xbf16> -> vector<8x256xbf16>
    %46 = vector.extract_strided_slice %9 {offsets = [3, 0, 0], sizes = [1, 4, 8], strides = [1, 1, 1]} : vector<9x4x8xbf16> to vector<1x4x8xbf16>
    %47 = vector.shape_cast %46 : vector<1x4x8xbf16> to vector<4x8xbf16>
    %cst_17 = arith.constant dense<0.000000e+00> : vector<4x256xf32>
    %48 = tpu.matmul %47, %45, %cst_17 {dimension_numbers = #tpu.dot_dimension_numbers<[1], [0], [0], [1], [0, 0, 1, 1], [], []>} : vector<4x8xbf16>, vector<8x256xbf16>, vector<4x256xf32> -> vector<4x256xf32>
    %49 = vector.extract_strided_slice %8 {offsets = [3, 0], sizes = [1, 256], strides = [1, 1]} : vector<9x256xf32> to vector<1x256xf32>
    %50 = vector.broadcast %49 : vector<1x256xf32> to vector<4x256xf32>
    %51 = arith.mulf %48, %50 : vector<4x256xf32>
    %52 = arith.addf %42, %51 : vector<4x256xf32>
    %53 = vector.extract_strided_slice %9 {offsets = [4, 0, 0], sizes = [1, 4, 8], strides = [1, 1, 1]} : vector<9x4x8xbf16> to vector<1x4x8xbf16>
    %54 = vector.shape_cast %53 : vector<1x4x8xbf16> to vector<4x8xbf16>
    %cst_18 = arith.constant dense<0.000000e+00> : vector<4x256xf32>
    %55 = tpu.matmul %54, %7, %cst_18 {dimension_numbers = #tpu.dot_dimension_numbers<[1], [0], [0], [1], [0, 0, 1, 1], [], []>} : vector<4x8xbf16>, vector<8x256xbf16>, vector<4x256xf32> -> vector<4x256xf32>
    %56 = arith.addf %52, %55 : vector<4x256xf32>
    %57 = vector.extract_strided_slice %7 {offsets = [0, 1], sizes = [8, 255], strides = [1, 1]} : vector<8x256xbf16> to vector<8x255xbf16>
    %58 = vector.extract_strided_slice %7 {offsets = [0, 0], sizes = [8, 1], strides = [1, 1]} : vector<8x256xbf16> to vector<8x1xbf16>
    %59 = tpu.concatenate %57, %58 in 1 : vector<8x255xbf16>, vector<8x1xbf16> -> vector<8x256xbf16>
    %60 = vector.extract_strided_slice %9 {offsets = [5, 0, 0], sizes = [1, 4, 8], strides = [1, 1, 1]} : vector<9x4x8xbf16> to vector<1x4x8xbf16>
    %61 = vector.shape_cast %60 : vector<1x4x8xbf16> to vector<4x8xbf16>
    %cst_19 = arith.constant dense<0.000000e+00> : vector<4x256xf32>
    %62 = tpu.matmul %61, %59, %cst_19 {dimension_numbers = #tpu.dot_dimension_numbers<[1], [0], [0], [1], [0, 0, 1, 1], [], []>} : vector<4x8xbf16>, vector<8x256xbf16>, vector<4x256xf32> -> vector<4x256xf32>
    %63 = vector.extract_strided_slice %8 {offsets = [5, 0], sizes = [1, 256], strides = [1, 1]} : vector<9x256xf32> to vector<1x256xf32>
    %64 = vector.broadcast %63 : vector<1x256xf32> to vector<4x256xf32>
    %65 = arith.mulf %62, %64 : vector<4x256xf32>
    %66 = arith.addf %56, %65 : vector<4x256xf32>
    %67 = vector.extract_strided_slice %7 {offsets = [0, 15], sizes = [8, 241], strides = [1, 1]} : vector<8x256xbf16> to vector<8x241xbf16>
    %68 = vector.extract_strided_slice %7 {offsets = [0, 0], sizes = [8, 15], strides = [1, 1]} : vector<8x256xbf16> to vector<8x15xbf16>
    %69 = tpu.concatenate %67, %68 in 1 : vector<8x241xbf16>, vector<8x15xbf16> -> vector<8x256xbf16>
    %70 = vector.extract_strided_slice %9 {offsets = [6, 0, 0], sizes = [1, 4, 8], strides = [1, 1, 1]} : vector<9x4x8xbf16> to vector<1x4x8xbf16>
    %71 = vector.shape_cast %70 : vector<1x4x8xbf16> to vector<4x8xbf16>
    %cst_20 = arith.constant dense<0.000000e+00> : vector<4x256xf32>
    %72 = tpu.matmul %71, %69, %cst_20 {dimension_numbers = #tpu.dot_dimension_numbers<[1], [0], [0], [1], [0, 0, 1, 1], [], []>} : vector<4x8xbf16>, vector<8x256xbf16>, vector<4x256xf32> -> vector<4x256xf32>
    %73 = vector.extract_strided_slice %8 {offsets = [6, 0], sizes = [1, 256], strides = [1, 1]} : vector<9x256xf32> to vector<1x256xf32>
    %74 = vector.broadcast %73 : vector<1x256xf32> to vector<4x256xf32>
    %75 = arith.mulf %72, %74 : vector<4x256xf32>
    %76 = arith.addf %66, %75 : vector<4x256xf32>
    %77 = vector.extract_strided_slice %7 {offsets = [0, 16], sizes = [8, 240], strides = [1, 1]} : vector<8x256xbf16> to vector<8x240xbf16>
    %78 = vector.extract_strided_slice %7 {offsets = [0, 0], sizes = [8, 16], strides = [1, 1]} : vector<8x256xbf16> to vector<8x16xbf16>
    %79 = tpu.concatenate %77, %78 in 1 : vector<8x240xbf16>, vector<8x16xbf16> -> vector<8x256xbf16>
    %80 = vector.extract_strided_slice %9 {offsets = [7, 0, 0], sizes = [1, 4, 8], strides = [1, 1, 1]} : vector<9x4x8xbf16> to vector<1x4x8xbf16>
    %81 = vector.shape_cast %80 : vector<1x4x8xbf16> to vector<4x8xbf16>
    %cst_21 = arith.constant dense<0.000000e+00> : vector<4x256xf32>
    %82 = tpu.matmul %81, %79, %cst_21 {dimension_numbers = #tpu.dot_dimension_numbers<[1], [0], [0], [1], [0, 0, 1, 1], [], []>} : vector<4x8xbf16>, vector<8x256xbf16>, vector<4x256xf32> -> vector<4x256xf32>
    %83 = vector.extract_strided_slice %8 {offsets = [7, 0], sizes = [1, 256], strides = [1, 1]} : vector<9x256xf32> to vector<1x256xf32>
    %84 = vector.broadcast %83 : vector<1x256xf32> to vector<4x256xf32>
    %85 = arith.mulf %82, %84 : vector<4x256xf32>
    %86 = arith.addf %76, %85 : vector<4x256xf32>
    %87 = vector.extract_strided_slice %7 {offsets = [0, 17], sizes = [8, 239], strides = [1, 1]} : vector<8x256xbf16> to vector<8x239xbf16>
    %88 = vector.extract_strided_slice %7 {offsets = [0, 0], sizes = [8, 17], strides = [1, 1]} : vector<8x256xbf16> to vector<8x17xbf16>
    %89 = tpu.concatenate %87, %88 in 1 : vector<8x239xbf16>, vector<8x17xbf16> -> vector<8x256xbf16>
    %90 = vector.extract_strided_slice %9 {offsets = [8, 0, 0], sizes = [1, 4, 8], strides = [1, 1, 1]} : vector<9x4x8xbf16> to vector<1x4x8xbf16>
    %91 = vector.shape_cast %90 : vector<1x4x8xbf16> to vector<4x8xbf16>
    %cst_22 = arith.constant dense<0.000000e+00> : vector<4x256xf32>
    %92 = tpu.matmul %91, %89, %cst_22 {dimension_numbers = #tpu.dot_dimension_numbers<[1], [0], [0], [1], [0, 0, 1, 1], [], []>} : vector<4x8xbf16>, vector<8x256xbf16>, vector<4x256xf32> -> vector<4x256xf32>
    %93 = vector.extract_strided_slice %8 {offsets = [8, 0], sizes = [1, 256], strides = [1, 1]} : vector<9x256xf32> to vector<1x256xf32>
    %94 = vector.broadcast %93 : vector<1x256xf32> to vector<4x256xf32>
    %95 = arith.mulf %92, %94 : vector<4x256xf32>
    %96 = arith.addf %86, %95 : vector<4x256xf32>
    %cst_23 = arith.constant 0.000000e+00 : f32
    %97 = vector.broadcast %cst_23 : f32 to vector<4x256xf32>
    %98 = arith.maximumf %96, %97 : vector<4x256xf32>
    %99 = arith.truncf %98 : vector<4x256xf32> to vector<4x256xbf16>
    %c0_24 = arith.constant 0 : index
    %c0_25 = arith.constant 0 : index
    %c0_26 = arith.constant 0 : index
    %100 = vector.load %arg7[%c0_24, %c0_25, %c0_26] : memref<9x4x4xbf16, #tpu.memory_space<vmem>>, vector<9x4x4xbf16>
    %c0_27 = arith.constant 0 : index
    %c0_28 = arith.constant 0 : index
    %101 = vector.load %arg8[%c0_27, %c0_28] : memref<4x1xf32, #tpu.memory_space<vmem>>, vector<4x1xf32>
    %102 = vector.shape_cast %101 : vector<4x1xf32> to vector<4x1xf32>
    %103 = vector.broadcast %102 : vector<4x1xf32> to vector<4x256xf32>
    %104 = vector.extract_strided_slice %99 {offsets = [0, 239], sizes = [4, 17], strides = [1, 1]} : vector<4x256xbf16> to vector<4x17xbf16>
    %105 = vector.extract_strided_slice %99 {offsets = [0, 0], sizes = [4, 239], strides = [1, 1]} : vector<4x256xbf16> to vector<4x239xbf16>
    %106 = tpu.concatenate %104, %105 in 1 : vector<4x17xbf16>, vector<4x239xbf16> -> vector<4x256xbf16>
    %107 = vector.extract_strided_slice %100 {offsets = [0, 0, 0], sizes = [1, 4, 4], strides = [1, 1, 1]} : vector<9x4x4xbf16> to vector<1x4x4xbf16>
    %108 = vector.shape_cast %107 : vector<1x4x4xbf16> to vector<4x4xbf16>
    %cst_29 = arith.constant dense<0.000000e+00> : vector<4x256xf32>
    %109 = tpu.matmul %108, %106, %cst_29 {dimension_numbers = #tpu.dot_dimension_numbers<[1], [0], [0], [1], [0, 0, 1, 1], [], []>} : vector<4x4xbf16>, vector<4x256xbf16>, vector<4x256xf32> -> vector<4x256xf32>
    %110 = vector.extract_strided_slice %8 {offsets = [0, 0], sizes = [1, 256], strides = [1, 1]} : vector<9x256xf32> to vector<1x256xf32>
    %111 = vector.broadcast %110 : vector<1x256xf32> to vector<4x256xf32>
    %112 = arith.mulf %109, %111 : vector<4x256xf32>
    %113 = arith.addf %103, %112 : vector<4x256xf32>
    %114 = vector.extract_strided_slice %99 {offsets = [0, 240], sizes = [4, 16], strides = [1, 1]} : vector<4x256xbf16> to vector<4x16xbf16>
    %115 = vector.extract_strided_slice %99 {offsets = [0, 0], sizes = [4, 240], strides = [1, 1]} : vector<4x256xbf16> to vector<4x240xbf16>
    %116 = tpu.concatenate %114, %115 in 1 : vector<4x16xbf16>, vector<4x240xbf16> -> vector<4x256xbf16>
    %117 = vector.extract_strided_slice %100 {offsets = [1, 0, 0], sizes = [1, 4, 4], strides = [1, 1, 1]} : vector<9x4x4xbf16> to vector<1x4x4xbf16>
    %118 = vector.shape_cast %117 : vector<1x4x4xbf16> to vector<4x4xbf16>
    %cst_30 = arith.constant dense<0.000000e+00> : vector<4x256xf32>
    %119 = tpu.matmul %118, %116, %cst_30 {dimension_numbers = #tpu.dot_dimension_numbers<[1], [0], [0], [1], [0, 0, 1, 1], [], []>} : vector<4x4xbf16>, vector<4x256xbf16>, vector<4x256xf32> -> vector<4x256xf32>
    %120 = vector.extract_strided_slice %8 {offsets = [1, 0], sizes = [1, 256], strides = [1, 1]} : vector<9x256xf32> to vector<1x256xf32>
    %121 = vector.broadcast %120 : vector<1x256xf32> to vector<4x256xf32>
    %122 = arith.mulf %119, %121 : vector<4x256xf32>
    %123 = arith.addf %113, %122 : vector<4x256xf32>
    %124 = vector.extract_strided_slice %99 {offsets = [0, 241], sizes = [4, 15], strides = [1, 1]} : vector<4x256xbf16> to vector<4x15xbf16>
    %125 = vector.extract_strided_slice %99 {offsets = [0, 0], sizes = [4, 241], strides = [1, 1]} : vector<4x256xbf16> to vector<4x241xbf16>
    %126 = tpu.concatenate %124, %125 in 1 : vector<4x15xbf16>, vector<4x241xbf16> -> vector<4x256xbf16>
    %127 = vector.extract_strided_slice %100 {offsets = [2, 0, 0], sizes = [1, 4, 4], strides = [1, 1, 1]} : vector<9x4x4xbf16> to vector<1x4x4xbf16>
    %128 = vector.shape_cast %127 : vector<1x4x4xbf16> to vector<4x4xbf16>
    %cst_31 = arith.constant dense<0.000000e+00> : vector<4x256xf32>
    %129 = tpu.matmul %128, %126, %cst_31 {dimension_numbers = #tpu.dot_dimension_numbers<[1], [0], [0], [1], [0, 0, 1, 1], [], []>} : vector<4x4xbf16>, vector<4x256xbf16>, vector<4x256xf32> -> vector<4x256xf32>
    %130 = vector.extract_strided_slice %8 {offsets = [2, 0], sizes = [1, 256], strides = [1, 1]} : vector<9x256xf32> to vector<1x256xf32>
    %131 = vector.broadcast %130 : vector<1x256xf32> to vector<4x256xf32>
    %132 = arith.mulf %129, %131 : vector<4x256xf32>
    %133 = arith.addf %123, %132 : vector<4x256xf32>
    %134 = vector.extract_strided_slice %99 {offsets = [0, 255], sizes = [4, 1], strides = [1, 1]} : vector<4x256xbf16> to vector<4x1xbf16>
    %135 = vector.extract_strided_slice %99 {offsets = [0, 0], sizes = [4, 255], strides = [1, 1]} : vector<4x256xbf16> to vector<4x255xbf16>
    %136 = tpu.concatenate %134, %135 in 1 : vector<4x1xbf16>, vector<4x255xbf16> -> vector<4x256xbf16>
    %137 = vector.extract_strided_slice %100 {offsets = [3, 0, 0], sizes = [1, 4, 4], strides = [1, 1, 1]} : vector<9x4x4xbf16> to vector<1x4x4xbf16>
    %138 = vector.shape_cast %137 : vector<1x4x4xbf16> to vector<4x4xbf16>
    %cst_32 = arith.constant dense<0.000000e+00> : vector<4x256xf32>
    %139 = tpu.matmul %138, %136, %cst_32 {dimension_numbers = #tpu.dot_dimension_numbers<[1], [0], [0], [1], [0, 0, 1, 1], [], []>} : vector<4x4xbf16>, vector<4x256xbf16>, vector<4x256xf32> -> vector<4x256xf32>
    %140 = vector.extract_strided_slice %8 {offsets = [3, 0], sizes = [1, 256], strides = [1, 1]} : vector<9x256xf32> to vector<1x256xf32>
    %141 = vector.broadcast %140 : vector<1x256xf32> to vector<4x256xf32>
    %142 = arith.mulf %139, %141 : vector<4x256xf32>
    %143 = arith.addf %133, %142 : vector<4x256xf32>
    %144 = vector.extract_strided_slice %100 {offsets = [4, 0, 0], sizes = [1, 4, 4], strides = [1, 1, 1]} : vector<9x4x4xbf16> to vector<1x4x4xbf16>
    %145 = vector.shape_cast %144 : vector<1x4x4xbf16> to vector<4x4xbf16>
    %cst_33 = arith.constant dense<0.000000e+00> : vector<4x256xf32>
    %146 = tpu.matmul %145, %99, %cst_33 {dimension_numbers = #tpu.dot_dimension_numbers<[1], [0], [0], [1], [0, 0, 1, 1], [], []>} : vector<4x4xbf16>, vector<4x256xbf16>, vector<4x256xf32> -> vector<4x256xf32>
    %147 = arith.addf %143, %146 : vector<4x256xf32>
    %148 = vector.extract_strided_slice %99 {offsets = [0, 1], sizes = [4, 255], strides = [1, 1]} : vector<4x256xbf16> to vector<4x255xbf16>
    %149 = vector.extract_strided_slice %99 {offsets = [0, 0], sizes = [4, 1], strides = [1, 1]} : vector<4x256xbf16> to vector<4x1xbf16>
    %150 = tpu.concatenate %148, %149 in 1 : vector<4x255xbf16>, vector<4x1xbf16> -> vector<4x256xbf16>
    %151 = vector.extract_strided_slice %100 {offsets = [5, 0, 0], sizes = [1, 4, 4], strides = [1, 1, 1]} : vector<9x4x4xbf16> to vector<1x4x4xbf16>
    %152 = vector.shape_cast %151 : vector<1x4x4xbf16> to vector<4x4xbf16>
    %cst_34 = arith.constant dense<0.000000e+00> : vector<4x256xf32>
    %153 = tpu.matmul %152, %150, %cst_34 {dimension_numbers = #tpu.dot_dimension_numbers<[1], [0], [0], [1], [0, 0, 1, 1], [], []>} : vector<4x4xbf16>, vector<4x256xbf16>, vector<4x256xf32> -> vector<4x256xf32>
    %154 = vector.extract_strided_slice %8 {offsets = [5, 0], sizes = [1, 256], strides = [1, 1]} : vector<9x256xf32> to vector<1x256xf32>
    %155 = vector.broadcast %154 : vector<1x256xf32> to vector<4x256xf32>
    %156 = arith.mulf %153, %155 : vector<4x256xf32>
    %157 = arith.addf %147, %156 : vector<4x256xf32>
    %158 = vector.extract_strided_slice %99 {offsets = [0, 15], sizes = [4, 241], strides = [1, 1]} : vector<4x256xbf16> to vector<4x241xbf16>
    %159 = vector.extract_strided_slice %99 {offsets = [0, 0], sizes = [4, 15], strides = [1, 1]} : vector<4x256xbf16> to vector<4x15xbf16>
    %160 = tpu.concatenate %158, %159 in 1 : vector<4x241xbf16>, vector<4x15xbf16> -> vector<4x256xbf16>
    %161 = vector.extract_strided_slice %100 {offsets = [6, 0, 0], sizes = [1, 4, 4], strides = [1, 1, 1]} : vector<9x4x4xbf16> to vector<1x4x4xbf16>
    %162 = vector.shape_cast %161 : vector<1x4x4xbf16> to vector<4x4xbf16>
    %cst_35 = arith.constant dense<0.000000e+00> : vector<4x256xf32>
    %163 = tpu.matmul %162, %160, %cst_35 {dimension_numbers = #tpu.dot_dimension_numbers<[1], [0], [0], [1], [0, 0, 1, 1], [], []>} : vector<4x4xbf16>, vector<4x256xbf16>, vector<4x256xf32> -> vector<4x256xf32>
    %164 = vector.extract_strided_slice %8 {offsets = [6, 0], sizes = [1, 256], strides = [1, 1]} : vector<9x256xf32> to vector<1x256xf32>
    %165 = vector.broadcast %164 : vector<1x256xf32> to vector<4x256xf32>
    %166 = arith.mulf %163, %165 : vector<4x256xf32>
    %167 = arith.addf %157, %166 : vector<4x256xf32>
    %168 = vector.extract_strided_slice %99 {offsets = [0, 16], sizes = [4, 240], strides = [1, 1]} : vector<4x256xbf16> to vector<4x240xbf16>
    %169 = vector.extract_strided_slice %99 {offsets = [0, 0], sizes = [4, 16], strides = [1, 1]} : vector<4x256xbf16> to vector<4x16xbf16>
    %170 = tpu.concatenate %168, %169 in 1 : vector<4x240xbf16>, vector<4x16xbf16> -> vector<4x256xbf16>
    %171 = vector.extract_strided_slice %100 {offsets = [7, 0, 0], sizes = [1, 4, 4], strides = [1, 1, 1]} : vector<9x4x4xbf16> to vector<1x4x4xbf16>
    %172 = vector.shape_cast %171 : vector<1x4x4xbf16> to vector<4x4xbf16>
    %cst_36 = arith.constant dense<0.000000e+00> : vector<4x256xf32>
    %173 = tpu.matmul %172, %170, %cst_36 {dimension_numbers = #tpu.dot_dimension_numbers<[1], [0], [0], [1], [0, 0, 1, 1], [], []>} : vector<4x4xbf16>, vector<4x256xbf16>, vector<4x256xf32> -> vector<4x256xf32>
    %174 = vector.extract_strided_slice %8 {offsets = [7, 0], sizes = [1, 256], strides = [1, 1]} : vector<9x256xf32> to vector<1x256xf32>
    %175 = vector.broadcast %174 : vector<1x256xf32> to vector<4x256xf32>
    %176 = arith.mulf %173, %175 : vector<4x256xf32>
    %177 = arith.addf %167, %176 : vector<4x256xf32>
    %178 = vector.extract_strided_slice %99 {offsets = [0, 17], sizes = [4, 239], strides = [1, 1]} : vector<4x256xbf16> to vector<4x239xbf16>
    %179 = vector.extract_strided_slice %99 {offsets = [0, 0], sizes = [4, 17], strides = [1, 1]} : vector<4x256xbf16> to vector<4x17xbf16>
    %180 = tpu.concatenate %178, %179 in 1 : vector<4x239xbf16>, vector<4x17xbf16> -> vector<4x256xbf16>
    %181 = vector.extract_strided_slice %100 {offsets = [8, 0, 0], sizes = [1, 4, 4], strides = [1, 1, 1]} : vector<9x4x4xbf16> to vector<1x4x4xbf16>
    %182 = vector.shape_cast %181 : vector<1x4x4xbf16> to vector<4x4xbf16>
    %cst_37 = arith.constant dense<0.000000e+00> : vector<4x256xf32>
    %183 = tpu.matmul %182, %180, %cst_37 {dimension_numbers = #tpu.dot_dimension_numbers<[1], [0], [0], [1], [0, 0, 1, 1], [], []>} : vector<4x4xbf16>, vector<4x256xbf16>, vector<4x256xf32> -> vector<4x256xf32>
    %184 = vector.extract_strided_slice %8 {offsets = [8, 0], sizes = [1, 256], strides = [1, 1]} : vector<9x256xf32> to vector<1x256xf32>
    %185 = vector.broadcast %184 : vector<1x256xf32> to vector<4x256xf32>
    %186 = arith.mulf %183, %185 : vector<4x256xf32>
    %187 = arith.addf %177, %186 : vector<4x256xf32>
    %cst_38 = arith.constant 0.000000e+00 : f32
    %188 = vector.broadcast %cst_38 : f32 to vector<4x256xf32>
    %189 = arith.maximumf %187, %188 : vector<4x256xf32>
    %190 = arith.truncf %189 : vector<4x256xf32> to vector<4x256xbf16>
    %c0_39 = arith.constant 0 : index
    %c0_40 = arith.constant 0 : index
    %c0_41 = arith.constant 0 : index
    %191 = vector.load %arg9[%c0_39, %c0_40, %c0_41] : memref<9x4x4xbf16, #tpu.memory_space<vmem>>, vector<9x4x4xbf16>
    %c0_42 = arith.constant 0 : index
    %c0_43 = arith.constant 0 : index
    %192 = vector.load %arg10[%c0_42, %c0_43] : memref<4x1xf32, #tpu.memory_space<vmem>>, vector<4x1xf32>
    %193 = vector.shape_cast %192 : vector<4x1xf32> to vector<4x1xf32>
    %194 = vector.broadcast %193 : vector<4x1xf32> to vector<4x256xf32>
    %195 = vector.extract_strided_slice %190 {offsets = [0, 239], sizes = [4, 17], strides = [1, 1]} : vector<4x256xbf16> to vector<4x17xbf16>
    %196 = vector.extract_strided_slice %190 {offsets = [0, 0], sizes = [4, 239], strides = [1, 1]} : vector<4x256xbf16> to vector<4x239xbf16>
    %197 = tpu.concatenate %195, %196 in 1 : vector<4x17xbf16>, vector<4x239xbf16> -> vector<4x256xbf16>
    %198 = vector.extract_strided_slice %191 {offsets = [0, 0, 0], sizes = [1, 4, 4], strides = [1, 1, 1]} : vector<9x4x4xbf16> to vector<1x4x4xbf16>
    %199 = vector.shape_cast %198 : vector<1x4x4xbf16> to vector<4x4xbf16>
    %cst_44 = arith.constant dense<0.000000e+00> : vector<4x256xf32>
    %200 = tpu.matmul %199, %197, %cst_44 {dimension_numbers = #tpu.dot_dimension_numbers<[1], [0], [0], [1], [0, 0, 1, 1], [], []>} : vector<4x4xbf16>, vector<4x256xbf16>, vector<4x256xf32> -> vector<4x256xf32>
    %201 = vector.extract_strided_slice %8 {offsets = [0, 0], sizes = [1, 256], strides = [1, 1]} : vector<9x256xf32> to vector<1x256xf32>
    %202 = vector.broadcast %201 : vector<1x256xf32> to vector<4x256xf32>
    %203 = arith.mulf %200, %202 : vector<4x256xf32>
    %204 = arith.addf %194, %203 : vector<4x256xf32>
    %205 = vector.extract_strided_slice %190 {offsets = [0, 240], sizes = [4, 16], strides = [1, 1]} : vector<4x256xbf16> to vector<4x16xbf16>
    %206 = vector.extract_strided_slice %190 {offsets = [0, 0], sizes = [4, 240], strides = [1, 1]} : vector<4x256xbf16> to vector<4x240xbf16>
    %207 = tpu.concatenate %205, %206 in 1 : vector<4x16xbf16>, vector<4x240xbf16> -> vector<4x256xbf16>
    %208 = vector.extract_strided_slice %191 {offsets = [1, 0, 0], sizes = [1, 4, 4], strides = [1, 1, 1]} : vector<9x4x4xbf16> to vector<1x4x4xbf16>
    %209 = vector.shape_cast %208 : vector<1x4x4xbf16> to vector<4x4xbf16>
    %cst_45 = arith.constant dense<0.000000e+00> : vector<4x256xf32>
    %210 = tpu.matmul %209, %207, %cst_45 {dimension_numbers = #tpu.dot_dimension_numbers<[1], [0], [0], [1], [0, 0, 1, 1], [], []>} : vector<4x4xbf16>, vector<4x256xbf16>, vector<4x256xf32> -> vector<4x256xf32>
    %211 = vector.extract_strided_slice %8 {offsets = [1, 0], sizes = [1, 256], strides = [1, 1]} : vector<9x256xf32> to vector<1x256xf32>
    %212 = vector.broadcast %211 : vector<1x256xf32> to vector<4x256xf32>
    %213 = arith.mulf %210, %212 : vector<4x256xf32>
    %214 = arith.addf %204, %213 : vector<4x256xf32>
    %215 = vector.extract_strided_slice %190 {offsets = [0, 241], sizes = [4, 15], strides = [1, 1]} : vector<4x256xbf16> to vector<4x15xbf16>
    %216 = vector.extract_strided_slice %190 {offsets = [0, 0], sizes = [4, 241], strides = [1, 1]} : vector<4x256xbf16> to vector<4x241xbf16>
    %217 = tpu.concatenate %215, %216 in 1 : vector<4x15xbf16>, vector<4x241xbf16> -> vector<4x256xbf16>
    %218 = vector.extract_strided_slice %191 {offsets = [2, 0, 0], sizes = [1, 4, 4], strides = [1, 1, 1]} : vector<9x4x4xbf16> to vector<1x4x4xbf16>
    %219 = vector.shape_cast %218 : vector<1x4x4xbf16> to vector<4x4xbf16>
    %cst_46 = arith.constant dense<0.000000e+00> : vector<4x256xf32>
    %220 = tpu.matmul %219, %217, %cst_46 {dimension_numbers = #tpu.dot_dimension_numbers<[1], [0], [0], [1], [0, 0, 1, 1], [], []>} : vector<4x4xbf16>, vector<4x256xbf16>, vector<4x256xf32> -> vector<4x256xf32>
    %221 = vector.extract_strided_slice %8 {offsets = [2, 0], sizes = [1, 256], strides = [1, 1]} : vector<9x256xf32> to vector<1x256xf32>
    %222 = vector.broadcast %221 : vector<1x256xf32> to vector<4x256xf32>
    %223 = arith.mulf %220, %222 : vector<4x256xf32>
    %224 = arith.addf %214, %223 : vector<4x256xf32>
    %225 = vector.extract_strided_slice %190 {offsets = [0, 255], sizes = [4, 1], strides = [1, 1]} : vector<4x256xbf16> to vector<4x1xbf16>
    %226 = vector.extract_strided_slice %190 {offsets = [0, 0], sizes = [4, 255], strides = [1, 1]} : vector<4x256xbf16> to vector<4x255xbf16>
    %227 = tpu.concatenate %225, %226 in 1 : vector<4x1xbf16>, vector<4x255xbf16> -> vector<4x256xbf16>
    %228 = vector.extract_strided_slice %191 {offsets = [3, 0, 0], sizes = [1, 4, 4], strides = [1, 1, 1]} : vector<9x4x4xbf16> to vector<1x4x4xbf16>
    %229 = vector.shape_cast %228 : vector<1x4x4xbf16> to vector<4x4xbf16>
    %cst_47 = arith.constant dense<0.000000e+00> : vector<4x256xf32>
    %230 = tpu.matmul %229, %227, %cst_47 {dimension_numbers = #tpu.dot_dimension_numbers<[1], [0], [0], [1], [0, 0, 1, 1], [], []>} : vector<4x4xbf16>, vector<4x256xbf16>, vector<4x256xf32> -> vector<4x256xf32>
    %231 = vector.extract_strided_slice %8 {offsets = [3, 0], sizes = [1, 256], strides = [1, 1]} : vector<9x256xf32> to vector<1x256xf32>
    %232 = vector.broadcast %231 : vector<1x256xf32> to vector<4x256xf32>
    %233 = arith.mulf %230, %232 : vector<4x256xf32>
    %234 = arith.addf %224, %233 : vector<4x256xf32>
    %235 = vector.extract_strided_slice %191 {offsets = [4, 0, 0], sizes = [1, 4, 4], strides = [1, 1, 1]} : vector<9x4x4xbf16> to vector<1x4x4xbf16>
    %236 = vector.shape_cast %235 : vector<1x4x4xbf16> to vector<4x4xbf16>
    %cst_48 = arith.constant dense<0.000000e+00> : vector<4x256xf32>
    %237 = tpu.matmul %236, %190, %cst_48 {dimension_numbers = #tpu.dot_dimension_numbers<[1], [0], [0], [1], [0, 0, 1, 1], [], []>} : vector<4x4xbf16>, vector<4x256xbf16>, vector<4x256xf32> -> vector<4x256xf32>
    %238 = arith.addf %234, %237 : vector<4x256xf32>
    %239 = vector.extract_strided_slice %190 {offsets = [0, 1], sizes = [4, 255], strides = [1, 1]} : vector<4x256xbf16> to vector<4x255xbf16>
    %240 = vector.extract_strided_slice %190 {offsets = [0, 0], sizes = [4, 1], strides = [1, 1]} : vector<4x256xbf16> to vector<4x1xbf16>
    %241 = tpu.concatenate %239, %240 in 1 : vector<4x255xbf16>, vector<4x1xbf16> -> vector<4x256xbf16>
    %242 = vector.extract_strided_slice %191 {offsets = [5, 0, 0], sizes = [1, 4, 4], strides = [1, 1, 1]} : vector<9x4x4xbf16> to vector<1x4x4xbf16>
    %243 = vector.shape_cast %242 : vector<1x4x4xbf16> to vector<4x4xbf16>
    %cst_49 = arith.constant dense<0.000000e+00> : vector<4x256xf32>
    %244 = tpu.matmul %243, %241, %cst_49 {dimension_numbers = #tpu.dot_dimension_numbers<[1], [0], [0], [1], [0, 0, 1, 1], [], []>} : vector<4x4xbf16>, vector<4x256xbf16>, vector<4x256xf32> -> vector<4x256xf32>
    %245 = vector.extract_strided_slice %8 {offsets = [5, 0], sizes = [1, 256], strides = [1, 1]} : vector<9x256xf32> to vector<1x256xf32>
    %246 = vector.broadcast %245 : vector<1x256xf32> to vector<4x256xf32>
    %247 = arith.mulf %244, %246 : vector<4x256xf32>
    %248 = arith.addf %238, %247 : vector<4x256xf32>
    %249 = vector.extract_strided_slice %190 {offsets = [0, 15], sizes = [4, 241], strides = [1, 1]} : vector<4x256xbf16> to vector<4x241xbf16>
    %250 = vector.extract_strided_slice %190 {offsets = [0, 0], sizes = [4, 15], strides = [1, 1]} : vector<4x256xbf16> to vector<4x15xbf16>
    %251 = tpu.concatenate %249, %250 in 1 : vector<4x241xbf16>, vector<4x15xbf16> -> vector<4x256xbf16>
    %252 = vector.extract_strided_slice %191 {offsets = [6, 0, 0], sizes = [1, 4, 4], strides = [1, 1, 1]} : vector<9x4x4xbf16> to vector<1x4x4xbf16>
    %253 = vector.shape_cast %252 : vector<1x4x4xbf16> to vector<4x4xbf16>
    %cst_50 = arith.constant dense<0.000000e+00> : vector<4x256xf32>
    %254 = tpu.matmul %253, %251, %cst_50 {dimension_numbers = #tpu.dot_dimension_numbers<[1], [0], [0], [1], [0, 0, 1, 1], [], []>} : vector<4x4xbf16>, vector<4x256xbf16>, vector<4x256xf32> -> vector<4x256xf32>
    %255 = vector.extract_strided_slice %8 {offsets = [6, 0], sizes = [1, 256], strides = [1, 1]} : vector<9x256xf32> to vector<1x256xf32>
    %256 = vector.broadcast %255 : vector<1x256xf32> to vector<4x256xf32>
    %257 = arith.mulf %254, %256 : vector<4x256xf32>
    %258 = arith.addf %248, %257 : vector<4x256xf32>
    %259 = vector.extract_strided_slice %190 {offsets = [0, 16], sizes = [4, 240], strides = [1, 1]} : vector<4x256xbf16> to vector<4x240xbf16>
    %260 = vector.extract_strided_slice %190 {offsets = [0, 0], sizes = [4, 16], strides = [1, 1]} : vector<4x256xbf16> to vector<4x16xbf16>
    %261 = tpu.concatenate %259, %260 in 1 : vector<4x240xbf16>, vector<4x16xbf16> -> vector<4x256xbf16>
    %262 = vector.extract_strided_slice %191 {offsets = [7, 0, 0], sizes = [1, 4, 4], strides = [1, 1, 1]} : vector<9x4x4xbf16> to vector<1x4x4xbf16>
    %263 = vector.shape_cast %262 : vector<1x4x4xbf16> to vector<4x4xbf16>
    %cst_51 = arith.constant dense<0.000000e+00> : vector<4x256xf32>
    %264 = tpu.matmul %263, %261, %cst_51 {dimension_numbers = #tpu.dot_dimension_numbers<[1], [0], [0], [1], [0, 0, 1, 1], [], []>} : vector<4x4xbf16>, vector<4x256xbf16>, vector<4x256xf32> -> vector<4x256xf32>
    %265 = vector.extract_strided_slice %8 {offsets = [7, 0], sizes = [1, 256], strides = [1, 1]} : vector<9x256xf32> to vector<1x256xf32>
    %266 = vector.broadcast %265 : vector<1x256xf32> to vector<4x256xf32>
    %267 = arith.mulf %264, %266 : vector<4x256xf32>
    %268 = arith.addf %258, %267 : vector<4x256xf32>
    %269 = vector.extract_strided_slice %190 {offsets = [0, 17], sizes = [4, 239], strides = [1, 1]} : vector<4x256xbf16> to vector<4x239xbf16>
    %270 = vector.extract_strided_slice %190 {offsets = [0, 0], sizes = [4, 17], strides = [1, 1]} : vector<4x256xbf16> to vector<4x17xbf16>
    %271 = tpu.concatenate %269, %270 in 1 : vector<4x239xbf16>, vector<4x17xbf16> -> vector<4x256xbf16>
    %272 = vector.extract_strided_slice %191 {offsets = [8, 0, 0], sizes = [1, 4, 4], strides = [1, 1, 1]} : vector<9x4x4xbf16> to vector<1x4x4xbf16>
    %273 = vector.shape_cast %272 : vector<1x4x4xbf16> to vector<4x4xbf16>
    %cst_52 = arith.constant dense<0.000000e+00> : vector<4x256xf32>
    %274 = tpu.matmul %273, %271, %cst_52 {dimension_numbers = #tpu.dot_dimension_numbers<[1], [0], [0], [1], [0, 0, 1, 1], [], []>} : vector<4x4xbf16>, vector<4x256xbf16>, vector<4x256xf32> -> vector<4x256xf32>
    %275 = vector.extract_strided_slice %8 {offsets = [8, 0], sizes = [1, 256], strides = [1, 1]} : vector<9x256xf32> to vector<1x256xf32>
    %276 = vector.broadcast %275 : vector<1x256xf32> to vector<4x256xf32>
    %277 = arith.mulf %274, %276 : vector<4x256xf32>
    %278 = arith.addf %268, %277 : vector<4x256xf32>
    %cst_53 = arith.constant 0.000000e+00 : f32
    %279 = vector.broadcast %cst_53 : f32 to vector<4x256xf32>
    %280 = arith.maximumf %278, %279 : vector<4x256xf32>
    %c0_54 = arith.constant 0 : index
    %c0_55 = arith.constant 0 : index
    %c0_56 = arith.constant 0 : index
    %281 = vector.load %arg11[%c0_54, %c0_55, %c0_56] : memref<1x4x256xf32, #tpu.memory_space<vmem>>, vector<1x4x256xf32>
    %282 = vector.shape_cast %281 : vector<1x4x256xf32> to vector<4x256xf32>
    %283 = vector.shape_cast %280 : vector<4x256xf32> to vector<1x4x256xf32>
    tpu.vector_store %arg11[%c0_54, %c0_55, %c0_56], %283 {strides = array<i32>} : memref<1x4x256xf32, #tpu.memory_space<vmem>>, vector<1x4x256xf32>,
    return
  }
  func.func @transform_0(%arg0: i32) -> (i32, i32, i32) {
    %c0_i32 = arith.constant 0 : i32
    %c0_i32_0 = arith.constant 0 : i32
    %c0_i32_1 = arith.constant 0 : i32
    return %arg0, %c0_i32, %c0_i32_0 : i32, i32, i32
  }
  func.func @transform_1(%arg0: i32) -> (i32, i32, i32) {
    %c0_i32 = arith.constant 0 : i32
    %c0_i32_0 = arith.constant 0 : i32
    %c0_i32_1 = arith.constant 0 : i32
    return %arg0, %c0_i32, %c0_i32_0 : i32, i32, i32
  }
  func.func @transform_2(%arg0: i32) -> (i32, i32) {
    %c0_i32 = arith.constant 0 : i32
    %c0_i32_0 = arith.constant 0 : i32
    %c0_i32_1 = arith.constant 0 : i32
    return %c0_i32, %c0_i32_0 : i32, i32
  }
  func.func @transform_3(%arg0: i32) -> (i32, i32) {
    %c0_i32 = arith.constant 0 : i32
    %c0_i32_0 = arith.constant 0 : i32
    %c0_i32_1 = arith.constant 0 : i32
    return %c0_i32, %c0_i32_0 : i32, i32
  }
  func.func @transform_4(%arg0: i32) -> (i32, i32, i32) {
    %c0_i32 = arith.constant 0 : i32
    %c0_i32_0 = arith.constant 0 : i32
    %c0_i32_1 = arith.constant 0 : i32
    %c0_i32_2 = arith.constant 0 : i32
    return %c0_i32, %c0_i32_0, %c0_i32_1 : i32, i32, i32
  }
  func.func @transform_5(%arg0: i32) -> (i32, i32) {
    %c0_i32 = arith.constant 0 : i32
    %c0_i32_0 = arith.constant 0 : i32
    %c0_i32_1 = arith.constant 0 : i32
    return %c0_i32, %c0_i32_0 : i32, i32
  }
  func.func @transform_6(%arg0: i32) -> (i32, i32, i32) {
    %c0_i32 = arith.constant 0 : i32
    %c0_i32_0 = arith.constant 0 : i32
    %c0_i32_1 = arith.constant 0 : i32
    %c0_i32_2 = arith.constant 0 : i32
    return %c0_i32, %c0_i32_0, %c0_i32_1 : i32, i32, i32
  }
  func.func @transform_7(%arg0: i32) -> (i32, i32) {
    %c0_i32 = arith.constant 0 : i32
    %c0_i32_0 = arith.constant 0 : i32
    %c0_i32_1 = arith.constant 0 : i32
    return %c0_i32, %c0_i32_0 : i32, i32
  }
  func.func @transform_8(%arg0: i32) -> (i32, i32, i32) {
    %c0_i32 = arith.constant 0 : i32
    %c0_i32_0 = arith.constant 0 : i32
    %c0_i32_1 = arith.constant 0 : i32
    %c0_i32_2 = arith.constant 0 : i32
    return %c0_i32, %c0_i32_0, %c0_i32_1 : i32, i32, i32
  }
  func.func @transform_9(%arg0: i32) -> (i32, i32) {
    %c0_i32 = arith.constant 0 : i32
    %c0_i32_0 = arith.constant 0 : i32
    %c0_i32_1 = arith.constant 0 : i32
    return %c0_i32, %c0_i32_0 : i32, i32
  }
  func.func @transform_10(%arg0: i32) -> (i32, i32, i32) {
    %c0_i32 = arith.constant 0 : i32
    %c0_i32_0 = arith.constant 0 : i32
    %c0_i32_1 = arith.constant 0 : i32
    return %arg0, %c0_i32, %c0_i32_0 : i32, i32, i32
  }
}

</mosaic_0001>

<llo_original>
// kernel: _unet_up_fused.1
$region0: #{_unet_up_fused.1}
  #allocation0 [shape = 'u32[]', space=smem, size = 0x4, offset = 0x4, fixed_abs, tag = 'smem constant byte address 0x4 - core index']
  #allocation1 [shape = 'u32[144,128]{1,0:T(1,128)}', space=vmem, size = 0x12000, scoped, tag = 'internal scratch']
  %s0 = inlined_call_operand.vmem [shape: bf16[2,4,64], index: 0, kind: input, shape index: {}]
  %s1 = inlined_call_operand.vmem [shape: bf16[2,4,256], index: 1, kind: input, shape index: {}]
  %s2 = inlined_call_operand.vmem [shape: bf16[64,256], index: 2, kind: input, shape index: {}]
  %s3 = inlined_call_operand.vmem [shape: f32[9,256], index: 3, kind: input, shape index: {}]
  %s4 = inlined_call_operand.vmem [shape: bf16[9,4,8], index: 4, kind: input, shape index: {}]
  %s5 = inlined_call_operand.vmem [shape: f32[4,1], index: 5, kind: input, shape index: {}]
  %s6 = inlined_call_operand.vmem [shape: bf16[9,4,4], index: 6, kind: input, shape index: {}]
  %s7 = inlined_call_operand.vmem [shape: f32[4,1], index: 7, kind: input, shape index: {}]
  %s8 = inlined_call_operand.vmem [shape: bf16[9,4,4], index: 8, kind: input, shape index: {}]
  %s9 = inlined_call_operand.vmem [shape: f32[4,1], index: 9, kind: input, shape index: {}]
  %s10 = inlined_call_operand.vmem [shape: f32[2,4,256], index: 10, kind: output, shape index: {}]
  %s11 = sld [smem:[#allocation0]]
  $region73: #{_unet_up_fused.1} parent=0
    _
  %s13 = ssub.s32 1, %s11
  %s14 = scalar_select 0, %s13, %s11
  loop: start=0, step=1, limit=4
  $region2: #{_unet_up_fused.1} parent=0 // loop_pre_header
    _
  $region3: #{_unet_up_fused.1} parent=0 // loop_header
    %s16 = sphi 0, %s20
    %p17 = scmp.ge.s32.totalorder %s16, 4
    %s26 = sphi 0, %s28
    %s29 = sphi 0, %s26
    %s30 = sphi 0, %s29
    %s46 = sphi 0, %s30
    %s52 = sphi 0, %s54
    %s55 = sphi 0, %s52
    %s56 = sphi 0, %s55
    %s72 = sphi 0, %s56
    %s76 = sphi 0, %s76
    %s78 = sphi 0, %s76
    %s79 = sphi 0, %s78
    %s93 = sphi 0, %s79
    %s97 = sphi 0, %s97
    %s99 = sphi 0, %s97
    %s100 = sphi 0, %s99
    %s114 = sphi 0, %s100
    %s118 = sphi 0, %s118
    %s120 = sphi 0, %s118
    %s121 = sphi 0, %s120
    %s135 = sphi 0, %s121
    %s139 = sphi 0, %s139
    %s141 = sphi 0, %s139
    %s142 = sphi 0, %s141
    %s156 = sphi 0, %s142
    %s160 = sphi 0, %s160
    %s162 = sphi 0, %s160
    %s163 = sphi 0, %s162
    %s177 = sphi 0, %s163
    %s181 = sphi 0, %s181
    %s183 = sphi 0, %s181
    %s184 = sphi 0, %s183
    %s198 = sphi 0, %s184
    %s202 = sphi 0, %s202
    %s204 = sphi 0, %s202
    %s205 = sphi 0, %s204
    %s219 = sphi 0, %s205
    %s223 = sphi 0, %s223
    %s225 = sphi 0, %s223
    %s226 = sphi 0, %s225
    %s240 = sphi 0, %s226
    %s246 = sphi 0, %s248
    %s249 = sphi 0, %s246
    %s250 = sphi 0, %s249
    %s266 = sphi 0, %s250
  $region4: #{_unet_up_fused.1} parent=0 // loop_header_branch
    %19 = sbr.rel (%p17) target = $region8
  $region5: #{_unet_up_fused.1} parent=0 // loop_body
    %s21 = ssub.s32 %s16, 1
    %s22 = ssub.s32 %s16, 2
    %s23 = sadd.s32 %s16, 1
    %s24 = ssub.s32 %s16, %s23
    %p25 = scmp.eq.s32.totalorder %s24, 0
    %s27 = sadd.s32 %s26, 1
    %s28 = scalar_select %p25, %s26, %s27
    %p31 = pneg %p25
    %p32 = scmp.eq.s32.totalorder %s16, 1
    %p33 = por %p31, %p32
    %p34 = scmp.ne.s32.totalorder %s26, %s29
    %p35 = scmp.eq.s32.totalorder %s16, 0
    %p36 = por %p34, %p35
    %p37 = scmp.ne.s32.totalorder %s26, %s29
    %p38 = scmp.eq.s32.totalorder %s21, 1
    %p39 = por %p37, %p38
    %p40 = scmp.ne.s32.totalorder %s29, %s30
    %p41 = scmp.eq.s32.totalorder %s21, 0
    %p42 = por %p40, %p41
    %p43 = scmp.ne.s32.totalorder %s29, %s30
    %p44 = scmp.eq.s32.totalorder %s22, 1
    %p45 = por %p43, %p44
    %p47 = scmp.ne.s32.totalorder %s30, %s46
    %p48 = scmp.eq.s32.totalorder %s22, 0
    %p49 = por %p47, %p48
    %s50 = ssub.s32 %s16, %s23
    %p51 = scmp.eq.s32.totalorder %s50, 0
    %s53 = sadd.s32 %s52, 1
    %s54 = scalar_select %p51, %s52, %s53
    %p57 = pneg %p51
    %p58 = scmp.eq.s32.totalorder %s16, 1
    %p59 = por %p57, %p58
    %p60 = scmp.ne.s32.totalorder %s52, %s55
    %p61 = scmp.eq.s32.totalorder %s16, 0
    %p62 = por %p60, %p61
    %p63 = scmp.ne.s32.totalorder %s52, %s55
    %p64 = scmp.eq.s32.totalorder %s21, 1
    %p65 = por %p63, %p64
    %p66 = scmp.ne.s32.totalorder %s55, %s56
    %p67 = scmp.eq.s32.totalorder %s21, 0
    %p68 = por %p66, %p67
    %p69 = scmp.ne.s32.totalorder %s55, %s56
    %p70 = scmp.eq.s32.totalorder %s22, 1
    %p71 = por %p69, %p70
    %p73 = scmp.ne.s32.totalorder %s56, %s72
    %p74 = scmp.eq.s32.totalorder %s22, 0
    %p75 = por %p73, %p74
    %s77 = sadd.s32 %s76, 1
    %p80 = scmp.eq.s32.totalorder %s16, 1
    %p81 = scmp.ne.s32.totalorder %s76, %s78
    %p82 = scmp.eq.s32.totalorder %s16, 0
    %p83 = por %p81, %p82
    %p84 = scmp.ne.s32.totalorder %s76, %s78
    %p85 = scmp.eq.s32.totalorder %s21, 1
    %p86 = por %p84, %p85
    %p87 = scmp.ne.s32.totalorder %s78, %s79
    %p88 = scmp.eq.s32.totalorder %s21, 0
    %p89 = por %p87, %p88
    %p90 = scmp.ne.s32.totalorder %s78, %s79
    %p91 = scmp.eq.s32.totalorder %s22, 1
    %p92 = por %p90, %p91
    %p94 = scmp.ne.s32.totalorder %s79, %s93
    %p95 = scmp.eq.s32.totalorder %s22, 0
    %p96 = por %p94, %p95
    %s98 = sadd.s32 %s97, 1
    %p101 = scmp.eq.s32.totalorder %s16, 1
    %p102 = scmp.ne.s32.totalorder %s97, %s99
    %p103 = scmp.eq.s32.totalorder %s16, 0
    %p104 = por %p102, %p103
    %p105 = scmp.ne.s32.totalorder %s97, %s99
    %p106 = scmp.eq.s32.totalorder %s21, 1
    %p107 = por %p105, %p106
    %p108 = scmp.ne.s32.totalorder %s99, %s100
    %p109 = scmp.eq.s32.totalorder %s21, 0
    %p110 = por %p108, %p109
    %p111 = scmp.ne.s32.totalorder %s99, %s100
    %p112 = scmp.eq.s32.totalorder %s22, 1
    %p113 = por %p111, %p112
    %p115 = scmp.ne.s32.totalorder %s100, %s114
    %p116 = scmp.eq.s32.totalorder %s22, 0
    %p117 = por %p115, %p116
    %s119 = sadd.s32 %s118, 1
    %p122 = scmp.eq.s32.totalorder %s16, 1
    %p123 = scmp.ne.s32.totalorder %s118, %s120
    %p124 = scmp.eq.s32.totalorder %s16, 0
    %p125 = por %p123, %p124
    %p126 = scmp.ne.s32.totalorder %s118, %s120
    %p127 = scmp.eq.s32.totalorder %s21, 1
    %p128 = por %p126, %p127
    %p129 = scmp.ne.s32.totalorder %s120, %s121
    %p130 = scmp.eq.s32.totalorder %s21, 0
    %p131 = por %p129, %p130
    %p132 = scmp.ne.s32.totalorder %s120, %s121
    %p133 = scmp.eq.s32.totalorder %s22, 1
    %p134 = por %p132, %p133
    %p136 = scmp.ne.s32.totalorder %s121, %s135
    %p137 = scmp.eq.s32.totalorder %s22, 0
    %p138 = por %p136, %p137
    %s140 = sadd.s32 %s139, 1
    %p143 = scmp.eq.s32.totalorder %s16, 1
    %p144 = scmp.ne.s32.totalorder %s139, %s141
    %p145 = scmp.eq.s32.totalorder %s16, 0
    %p146 = por %p144, %p145
    %p147 = scmp.ne.s32.totalorder %s139, %s141
    %p148 = scmp.eq.s32.totalorder %s21, 1
    %p149 = por %p147, %p148
    %p150 = scmp.ne.s32.totalorder %s141, %s142
    %p151 = scmp.eq.s32.totalorder %s21, 0
    %p152 = por %p150, %p151
    %p153 = scmp.ne.s32.totalorder %s141, %s142
    %p154 = scmp.eq.s32.totalorder %s22, 1
    %p155 = por %p153, %p154
    %p157 = scmp.ne.s32.totalorder %s142, %s156
    %p158 = scmp.eq.s32.totalorder %s22, 0
    %p159 = por %p157, %p158
    %s161 = sadd.s32 %s160, 1
    %p164 = scmp.eq.s32.totalorder %s16, 1
    %p165 = scmp.ne.s32.totalorder %s160, %s162
    %p166 = scmp.eq.s32.totalorder %s16, 0
    %p167 = por %p165, %p166
    %p168 = scmp.ne.s32.totalorder %s160, %s162
    %p169 = scmp.eq.s32.totalorder %s21, 1
    %p170 = por %p168, %p169
    %p171 = scmp.ne.s32.totalorder %s162, %s163
    %p172 = scmp.eq.s32.totalorder %s21, 0
    %p173 = por %p171, %p172
    %p174 = scmp.ne.s32.totalorder %s162, %s163
    %p175 = scmp.eq.s32.totalorder %s22, 1
    %p176 = por %p174, %p175
    %p178 = scmp.ne.s32.totalorder %s163, %s177
    %p179 = scmp.eq.s32.totalorder %s22, 0
    %p180 = por %p178, %p179
    %s182 = sadd.s32 %s181, 1
    %p185 = scmp.eq.s32.totalorder %s16, 1
    %p186 = scmp.ne.s32.totalorder %s181, %s183
    %p187 = scmp.eq.s32.totalorder %s16, 0
    %p188 = por %p186, %p187
    %p189 = scmp.ne.s32.totalorder %s181, %s183
    %p190 = scmp.eq.s32.totalorder %s21, 1
    %p191 = por %p189, %p190
    %p192 = scmp.ne.s32.totalorder %s183, %s184
    %p193 = scmp.eq.s32.totalorder %s21, 0
    %p194 = por %p192, %p193
    %p195 = scmp.ne.s32.totalorder %s183, %s184
    %p196 = scmp.eq.s32.totalorder %s22, 1
    %p197 = por %p195, %p196
    %p199 = scmp.ne.s32.totalorder %s184, %s198
    %p200 = scmp.eq.s32.totalorder %s22, 0
    %p201 = por %p199, %p200
    %s203 = sadd.s32 %s202, 1
    %p206 = scmp.eq.s32.totalorder %s16, 1
    %p207 = scmp.ne.s32.totalorder %s202, %s204
    %p208 = scmp.eq.s32.totalorder %s16, 0
    %p209 = por %p207, %p208
    %p210 = scmp.ne.s32.totalorder %s202, %s204
    %p211 = scmp.eq.s32.totalorder %s21, 1
    %p212 = por %p210, %p211
    %p213 = scmp.ne.s32.totalorder %s204, %s205
    %p214 = scmp.eq.s32.totalorder %s21, 0
    %p215 = por %p213, %p214
    %p216 = scmp.ne.s32.totalorder %s204, %s205
    %p217 = scmp.eq.s32.totalorder %s22, 1
    %p218 = por %p216, %p217
    %p220 = scmp.ne.s32.totalorder %s205, %s219
    %p221 = scmp.eq.s32.totalorder %s22, 0
    %p222 = por %p220, %p221
    %s224 = sadd.s32 %s223, 1
    %p227 = scmp.eq.s32.totalorder %s16, 1
    %p228 = scmp.ne.s32.totalorder %s223, %s225
    %p229 = scmp.eq.s32.totalorder %s16, 0
    %p230 = por %p228, %p229
    %p231 = scmp.ne.s32.totalorder %s223, %s225
    %p232 = scmp.eq.s32.totalorder %s21, 1
    %p233 = por %p231, %p232
    %p234 = scmp.ne.s32.totalorder %s225, %s226
    %p235 = scmp.eq.s32.totalorder %s21, 0
    %p236 = por %p234, %p235
    %p237 = scmp.ne.s32.totalorder %s225, %s226
    %p238 = scmp.eq.s32.totalorder %s22, 1
    %p239 = por %p237, %p238
    %p241 = scmp.ne.s32.totalorder %s226, %s240
    %p242 = scmp.eq.s32.totalorder %s22, 0
    %p243 = por %p241, %p242
    %s244 = ssub.s32 %s16, %s23
    %p245 = scmp.eq.s32.totalorder %s244, 0
    %s247 = sadd.s32 %s246, 1
    %s248 = scalar_select %p245, %s246, %s247
    %p251 = pneg %p245
    %p252 = scmp.eq.s32.totalorder %s16, 1
    %p253 = por %p251, %p252
    %p254 = scmp.ne.s32.totalorder %s246, %s249
    %p255 = scmp.eq.s32.totalorder %s16, 0
    %p256 = por %p254, %p255
    %p257 = scmp.ne.s32.totalorder %s246, %s249
    %p258 = scmp.eq.s32.totalorder %s21, 1
    %p259 = por %p257, %p258
    %p260 = scmp.ne.s32.totalorder %s249, %s250
    %p261 = scmp.eq.s32.totalorder %s21, 0
    %p262 = por %p260, %p261
    %p263 = scmp.ne.s32.totalorder %s249, %s250
    %p264 = scmp.eq.s32.totalorder %s22, 1
    %p265 = por %p263, %p264
    %p267 = scmp.ne.s32.totalorder %s250, %s266
    %p268 = scmp.eq.s32.totalorder %s22, 0
    %p269 = por %p267, %p268
    %p270 = scmp.le.s32.totalorder 1, %s16
    %p271 = scmp.lt.s32.totalorder %s16, 3
    %p272 = pnand %p270, %p271
    %p273 = pneg %p272
    // Predicated region
    $region9: #{_unet_up_fused.1} parent=5 // pred_check
      _
    $region10: #{_unet_up_fused.1} parent=5 // pred_check_branch
      %275 = sbr.rel (%p272) target = $region12
    $region11: #{_unet_up_fused.1} parent=5 // pred_region
      %s276 = ssub.s32 %s16, 1
      // Predicated region
      $region13: #{_unet_up_fused.1} parent=11 // pred_check
        %p277 = pneg %p89
      $region14: #{_unet_up_fused.1} parent=11 // pred_check_branch
        %279 = sbr.rel (%p277) target = $region16
      $region15: #{_unet_up_fused.1} parent=11 // pred_region
        _
      $region16: #{_unet_up_fused.1} parent=11 // pred_fallthru
        _
      // Predicated region
      $region17: #{_unet_up_fused.1} parent=11 // pred_check
        %p280 = pneg %p110
      $region18: #{_unet_up_fused.1} parent=11 // pred_check_branch
        %282 = sbr.rel (%p280) target = $region20
      $region19: #{_unet_up_fused.1} parent=11 // pred_region
        _
      $region20: #{_unet_up_fused.1} parent=11 // pred_fallthru
        _
      // Predicated region
      $region21: #{_unet_up_fused.1} parent=11 // pred_check
        %p283 = pneg %p131
      $region22: #{_unet_up_fused.1} parent=11 // pred_check_branch
        %285 = sbr.rel (%p283) target = $region24
      $region23: #{_unet_up_fused.1} parent=11 // pred_region
        _
      $region24: #{_unet_up_fused.1} parent=11 // pred_fallthru
        _
      // Predicated region
      $region25: #{_unet_up_fused.1} parent=11 // pred_check
        %p286 = pneg %p152
      $region26: #{_unet_up_fused.1} parent=11 // pred_check_branch
        %288 = sbr.rel (%p286) target = $region28
      $region27: #{_unet_up_fused.1} parent=11 // pred_region
        _
      $region28: #{_unet_up_fused.1} parent=11 // pred_fallthru
        _
      // Predicated region
      $region29: #{_unet_up_fused.1} parent=11 // pred_check
        %p289 = pneg %p173
      $region30: #{_unet_up_fused.1} parent=11 // pred_check_branch
        %291 = sbr.rel (%p289) target = $region32
      $region31: #{_unet_up_fused.1} parent=11 // pred_region
        _
      $region32: #{_unet_up_fused.1} parent=11 // pred_fallthru
        _
      // Predicated region
      $region33: #{_unet_up_fused.1} parent=11 // pred_check
        %p292 = pneg %p194
      $region34: #{_unet_up_fused.1} parent=11 // pred_check_branch
        %294 = sbr.rel (%p292) target = $region36
      $region35: #{_unet_up_fused.1} parent=11 // pred_region
        _
      $region36: #{_unet_up_fused.1} parent=11 // pred_fallthru
        _
      // Predicated region
      $region37: #{_unet_up_fused.1} parent=11 // pred_check
        %p295 = pneg %p215
      $region38: #{_unet_up_fused.1} parent=11 // pred_check_branch
        %297 = sbr.rel (%p295) target = $region40
      $region39: #{_unet_up_fused.1} parent=11 // pred_region
        _
      $region40: #{_unet_up_fused.1} parent=11 // pred_fallthru
        _
      // Predicated region
      $region41: #{_unet_up_fused.1} parent=11 // pred_check
        %p298 = pneg %p236
      $region42: #{_unet_up_fused.1} parent=11 // pred_check_branch
        %300 = sbr.rel (%p298) target = $region44
      $region43: #{_unet_up_fused.1} parent=11 // pred_region
        _
      $region44: #{_unet_up_fused.1} parent=11 // pred_fallthru
        _
    $region12: #{_unet_up_fused.1} parent=5 // pred_fallthru
      _
    %p301 = scmp.lt.s32.totalorder %s16, 2
    // Predicated region
    $region45: #{_unet_up_fused.1} parent=5 // pred_check
      %p302 = pneg %p301
    $region46: #{_unet_up_fused.1} parent=5 // pred_check_branch
      %304 = sbr.rel (%p302) target = $region48
    $region47: #{_unet_up_fused.1} parent=5 // pred_region
      // Predicated region
      $region49: #{_unet_up_fused.1} parent=47 // pred_check
        %p305 = pneg %p36
      $region50: #{_unet_up_fused.1} parent=47 // pred_check_branch
        %307 = sbr.rel (%p305) target = $region52
      $region51: #{_unet_up_fused.1} parent=47 // pred_region
        %p308 = scmp.lt.s32.totalorder %s16, 1
        %s309 = scalar_select %p308, %s16, 1
        %s310 = smul.addr %s309, 2
        %s311 = scalar_lea.vmem %s0, %s310
      $region52: #{_unet_up_fused.1} parent=47 // pred_fallthru
        _
      // Predicated region
      $region53: #{_unet_up_fused.1} parent=47 // pred_check
        %p312 = pneg %p62
      $region54: #{_unet_up_fused.1} parent=47 // pred_check_branch
        %314 = sbr.rel (%p312) target = $region56
      $region55: #{_unet_up_fused.1} parent=47 // pred_region
        %p315 = scmp.lt.s32.totalorder %s16, 1
        %s316 = scalar_select %p315, %s16, 1
        %s317 = smul.addr %s316, 2
        %s318 = smul.addr %s317, 2
        %s319 = scalar_lea.vmem %s1, %s318
      $region56: #{_unet_up_fused.1} parent=47 // pred_fallthru
        _
    $region48: #{_unet_up_fused.1} parent=5 // pred_fallthru
      _
    %p320 = scmp.le.s32.totalorder 1, %s16
    %p321 = scmp.lt.s32.totalorder %s16, 3
    %p322 = pnand %p320, %p321
    %p323 = pneg %p322
    // Predicated region
    $region57: #{_unet_up_fused.1} parent=5 // pred_check
      _
    $region58: #{_unet_up_fused.1} parent=5 // pred_check_branch
      %325 = sbr.rel (%p322) target = $region60
    $region59: #{_unet_up_fused.1} parent=5 // pred_region
      %s326 = ssub.s32 %s16, 1
      %p327 = scmp.lt.s32.totalorder %s21, 1
      %s328 = scalar_select %p327, %s21, 1
      %s329 = smul.addr %s328, 2
      %s330 = scalar_lea.vmem %s0, %s329
      %p331 = pneg %p42
      %p332 = pneg %p39
      %p333 = scmp.lt.s32.totalorder %s21, 1
      %s334 = scalar_select %p333, %s21, 1
      %s335 = smul.addr %s334, 2
      %s336 = smul.addr %s335, 2
      %s337 = scalar_lea.vmem %s1, %s336
      %p338 = pneg %p68
      %p339 = pneg %p65
      %p340 = pneg %p89
      %p341 = pneg %p86
      %p342 = pneg %p110
      %p343 = pneg %p107
      %p344 = pneg %p131
      %p345 = pneg %p128
      %p346 = pneg %p152
      %p347 = pneg %p149
      %p348 = pneg %p173
      %p349 = pneg %p170
      %p350 = pneg %p194
      %p351 = pneg %p191
      %p352 = pneg %p215
      %p353 = pneg %p212
      %p354 = pneg %p236
      %p355 = pneg %p233
      %p356 = pneg %p262
      %p357 = pneg %p259
      %p358 = scmp.lt.s32.totalorder %s21, 1
      %s359 = scalar_select %p358, %s21, 1
      %s360 = smul.addr %s359, 2
      %s361 = smul.addr %s360, 4
      %s362 = scalar_lea.vmem %s10, %s361
      %p363 = scmp.lt.s32.totalorder %s21, 1
      %s364 = scalar_select %p363, %s21, 1
      %s365 = smul.addr %s364, 2
      %s366 = scalar_lea.vmem %s0, %s365
      %p367 = scmp.lt.s32.totalorder %s21, 1
      %s368 = scalar_select %p367, %s21, 1
      %s369 = smul.addr %s368, 2
      %s370 = smul.addr %s369, 2
      %s371 = scalar_lea.vmem %s1, %s370
      %p372 = scmp.lt.s32.totalorder %s21, 1
      %s373 = scalar_select %p372, %s21, 1
      %s374 = smul.addr %s373, 2
      %s375 = smul.addr %s374, 4
      %s376 = scalar_lea.vmem %s10, %s375
      %v378 = vld [vmem:[%s366] sm:$0x3]
      %v379 = vld [vmem:[%s2] sm:$0xff]
      %v380 = vld [vmem:[%s2 + $0x8] sm:$0xff]
      %v381 = vld [vmem:[%s2 + $0x10] sm:$0xff]
      %v382 = vld [vmem:[%s2 + $0x18] sm:$0xff]
      %v383 = vld [vmem:[%s2 + $0x20] sm:$0xff]
      %v384 = vld [vmem:[%s2 + $0x28] sm:$0xff]
      %v385 = vld [vmem:[%s2 + $0x30] sm:$0xff]
      %v386 = vld [vmem:[%s2 + $0x38] sm:$0xff]
      %v395 = vunpack.c.l.b16 %v379
      %v396 = vunpack.c.h.b16 %v379
      %v397 = vunpack.c.l.b16 %v380
      %v398 = vunpack.c.h.b16 %v380
      %v399 = vunpack.c.l.b16 %v381
      %v400 = vunpack.c.h.b16 %v381
      %v401 = vunpack.c.l.b16 %v382
      %v402 = vunpack.c.h.b16 %v382
      %v403 = vunpack.c.l.b16 %v383
      %v404 = vunpack.c.h.b16 %v383
      %v405 = vunpack.c.l.b16 %v384
      %v406 = vunpack.c.h.b16 %v384
      %v407 = vunpack.c.l.b16 %v385
      %v408 = vunpack.c.h.b16 %v385
      %v409 = vunpack.c.l.b16 %v386
      %v410 = vunpack.c.h.b16 %v386
      %v411 = vpack.c.b16 %v397, %v395
      %v412 = vpack.c.b16 %v398, %v396
      %v413 = vpack.c.b16 %v401, %v399
      %v414 = vpack.c.b16 %v402, %v400
      %v415 = vpack.c.b16 %v405, %v403
      %v416 = vpack.c.b16 %v406, %v404
      %v417 = vpack.c.b16 %v409, %v407
      %v418 = vpack.c.b16 %v410, %v408
      %vm427 = vcmask 523264
      %v429 = vsel %vm427, %v378, 0
      %431 = vmatprep.subr.bf16.mxu0 %v412
      %432 = vmatpush1.bf16.msra.mxu0 %v411
      %433 = vmatprep.subr.bf16.mxu0 %v414
      %434 = vmatpush1.bf16.msra.mxu0 %v413
      %435 = vmatprep.subr.bf16.mxu0 %v416
      %436 = vmatpush1.bf16.msra.mxu0 %v415
      %437 = vmatprep.subr.bf16.mxu0 %v418
      %438 = vmatpush1.bf16.msra.mxu0 %v417
      %439 = vmatprep.subr.bf16.mxu0 0
      %440 = vmatpush1.bf16.msra.mxu0 0
      %441 = vmatprep.subr.bf16.mxu0 0
      %442 = vmatpush1.bf16.msra.mxu0 0
      %443 = vmatprep.subr.bf16.mxu0 0
      %444 = vmatpush1.bf16.msra.mxu0 0
      %445 = vmatprep.subr.bf16.mxu0 0
      %446 = vmatpush1.bf16.msra.mxu0 0
      %447 = vmatprep.subr.bf16.mxu0 0
      %448 = vmatpush1.bf16.msra.mxu0 0
      %449 = vmatprep.subr.bf16.mxu0 0
      %450 = vmatpush1.bf16.msra.mxu0 0
      %451 = vmatprep.subr.bf16.mxu0 0
      %452 = vmatpush1.bf16.msra.mxu0 0
      %453 = vmatprep.subr.bf16.mxu0 0
      %454 = vmatpush1.bf16.msra.mxu0 0
      %455 = vmatprep.subr.bf16.mxu0 0
      %456 = vmatpush1.bf16.msra.mxu0 0
      %457 = vmatprep.subr.bf16.mxu0 0
      %458 = vmatpush1.bf16.msra.mxu0 0
      %459 = vmatprep.subr.bf16.mxu0 0
      %460 = vmatpush1.bf16.msra.mxu0 0
      %461 = vmatprep.subr.bf16.mxu0 0
      %462 = vmatpush1.bf16.msra.mxu0 0
      %463 = vmatprep.mubr.bf16.mxu0 0
      %464 = vmatmul.mubr.bf16.gmra.mrb[0].mxu0 %v429
      %v465 = vpop.f32.mrb[0].mxu0
      %v466 = vadd.f32 0.0, %v465
      %v467 = vpop.f32.mrb[0].mxu0
      %v468 = vadd.f32 0.0, %v467
      %v469 = vpop.f32.mrb[0].mxu0
      %v470 = vpop.f32.mrb[0].mxu0
      %471 = vdwg.mxu0
      %v472 = vpack.c.bf16 %v466, %v466
      %v473 = vpack.c.bf16 %v468, %v468
      %v474 = vld [vmem:[%s371] sm:$0xf]
      %v476 = vcombine.low %v474, %v474
      %v478 = vunpack.c.l.s4 1983009808
      %v479 = vunpack.c.0.s8 %v478
      %v480 = vlaneseq
      %v481 = vshrl.u32 %v480, 7
      %v482 = vsub.s32 %v479, %v481
      %v483 = vrot.slane %v476, %v482
      %v484 = vcombine.high %v483, %v483
      %vm485 = vcmask 1041408
      %v488 = vsel %vm485, %v472, %v483
      %v491 = vsel %vm485, %v473, %v484
      %v492 = vld [vmem:[%s3] sm:$0xff]
      %v493 = vld [vmem:[%s3 + $0x8] sm:$0xff]
      %v494 = vld [vmem:[%s3 + $0x10] sm:$0x1]
      %v495 = vld [vmem:[%s3 + $0x18] sm:$0x1]
      %v496 = vld [vmem:[%s4] sm:$0x3]
      %v497 = vld [vmem:[%s4 + $0x2] sm:$0x3]
      %v498 = vld [vmem:[%s4 + $0x4] sm:$0x3]
      %v499 = vld [vmem:[%s4 + $0x6] sm:$0x3]
      %v500 = vld [vmem:[%s4 + $0x8] sm:$0x3]
      %v501 = vld [vmem:[%s4 + $0xa] sm:$0x3]
      %v502 = vld [vmem:[%s4 + $0xc] sm:$0x3]
      %v503 = vld [vmem:[%s4 + $0xe] sm:$0x3]
      %v504 = vld [vmem:[%s4 + $0x10] sm:$0x3]
      %v505 = vld [vmem:[%s5] sm:$0xf]
      %507 = vset.pattern.permute.xlu0 0
      %508 = vperm.xlu0 %507, %v505
      %v509 = vpop.permute.xlu0 %508
      %512 = vrot.lane.b32.xlu0 %v491, 17
      %v513 = vpop.permute.xlu0 %512
      %515 = vrot.lane.b32.xlu0 %v488, 17
      %v516 = vpop.permute.xlu0 %515
      %vm517 = vcmask 138240
      %v518 = vsel %vm517, %v516, %v513
      %vm519 = vcmask 138240
      %v522 = vsel %vm519, %v513, %v516
      %vm523 = vcmask 64512
      %v525 = vsel %vm523, %v496, 0
      %vm527 = vcmask 1043456
      %v528 = vsel %vm527, %v522, 0
      %v531 = vsel %vm527, %v518, 0
      %533 = vmatprep.subr.bf16.mxu0 %v531
      %534 = vmatpush1.bf16.msra.mxu0 %v528
      %535 = vmatprep.subr.bf16.mxu0 0
      %536 = vmatpush1.bf16.msra.mxu0 0
      %537 = vmatprep.subr.bf16.mxu0 0
      %538 = vmatpush1.bf16.msra.mxu0 0
      %539 = vmatprep.subr.bf16.mxu0 0
      %540 = vmatpush1.bf16.msra.mxu0 0
      %541 = vmatprep.subr.bf16.mxu0 0
      %542 = vmatpush1.bf16.msra.mxu0 0
      %543 = vmatprep.subr.bf16.mxu0 0
      %544 = vmatpush1.bf16.msra.mxu0 0
      %545 = vmatprep.subr.bf16.mxu0 0
      %546 = vmatpush1.bf16.msra.mxu0 0
      %547 = vmatprep.subr.bf16.mxu0 0
      %548 = vmatpush1.bf16.msra.mxu0 0
      %549 = vmatprep.subr.bf16.mxu0 0
      %550 = vmatpush1.bf16.msra.mxu0 0
      %551 = vmatprep.subr.bf16.mxu0 0
      %552 = vmatpush1.bf16.msra.mxu0 0
      %553 = vmatprep.subr.bf16.mxu0 0
      %554 = vmatpush1.bf16.msra.mxu0 0
      %555 = vmatprep.subr.bf16.mxu0 0
      %556 = vmatpush1.bf16.msra.mxu0 0
      %557 = vmatprep.subr.bf16.mxu0 0
      %558 = vmatpush1.bf16.msra.mxu0 0
      %559 = vmatprep.subr.bf16.mxu0 0
      %560 = vmatpush1.bf16.msra.mxu0 0
      %561 = vmatprep.subr.bf16.mxu0 0
      %562 = vmatpush1.bf16.msra.mxu0 0
      %563 = vmatprep.subr.bf16.mxu0 0
      %564 = vmatpush1.bf16.msra.mxu0 0
      %565 = vmatprep.mubr.bf16.mxu0 0
      %566 = vmatmul.mubr.bf16.gmra.mrb[0].mxu0 %v525
      %v567 = vpop.f32.mrb[0].mxu0
      %v568 = vadd.f32 0.0, %v567
      %v569 = vpop.f32.mrb[0].mxu0
      %v570 = vadd.f32 0.0, %v569
      %v571 = vpop.f32.mrb[0].mxu0
      %v572 = vpop.f32.mrb[0].mxu0
      %573 = vdwg.mxu0
      %v574 = vlaneseq
      %v575 = vshrl.u32 %v574, 7
      %v576 = vsub.s32 0, %v575
      %v577 = vrot.slane %v492, %v576
      %v578 = vlaneseq
      %v579 = vshrl.u32 %v578, 7
      %v580 = vsub.s32 0, %v579
      %v581 = vrot.slane %v493, %v580
      %v582 = vmul.f32 %v568, %v577
      %v583 = vmul.f32 %v570, %v581
      %v584 = vadd.f32 %v509, %v582
      %v585 = vadd.f32 %v509, %v583
      %586 = vrot.lane.b32.xlu0 %v491, 16
      %v587 = vpop.permute.xlu0 %586
      %588 = vrot.lane.b32.xlu0 %v488, 16
      %v589 = vpop.permute.xlu0 %588
      %vm590 = vcmask 130048
      %v591 = vsel %vm590, %v589, %v587
      %vm592 = vcmask 130048
      %v595 = vsel %vm592, %v587, %v589
      %v597 = vsel %vm523, %v497, 0
      %v599 = vsel %vm527, %v595, 0
      %v602 = vsel %vm527, %v591, 0
      %604 = vmatprep.subr.bf16.mxu0 %v602
      %605 = vmatpush1.bf16.msra.mxu0 %v599
      %606 = vmatprep.subr.bf16.mxu0 0
      %607 = vmatpush1.bf16.msra.mxu0 0
      %608 = vmatprep.subr.bf16.mxu0 0
      %609 = vmatpush1.bf16.msra.mxu0 0
      %610 = vmatprep.subr.bf16.mxu0 0
      %611 = vmatpush1.bf16.msra.mxu0 0
      %612 = vmatprep.subr.bf16.mxu0 0
      %613 = vmatpush1.bf16.msra.mxu0 0
      %614 = vmatprep.subr.bf16.mxu0 0
      %615 = vmatpush1.bf16.msra.mxu0 0
      %616 = vmatprep.subr.bf16.mxu0 0
      %617 = vmatpush1.bf16.msra.mxu0 0
      %618 = vmatprep.subr.bf16.mxu0 0
      %619 = vmatpush1.bf16.msra.mxu0 0
      %620 = vmatprep.subr.bf16.mxu0 0
      %621 = vmatpush1.bf16.msra.mxu0 0
      %622 = vmatprep.subr.bf16.mxu0 0
      %623 = vmatpush1.bf16.msra.mxu0 0
      %624 = vmatprep.subr.bf16.mxu0 0
      %625 = vmatpush1.bf16.msra.mxu0 0
      %626 = vmatprep.subr.bf16.mxu0 0
      %627 = vmatpush1.bf16.msra.mxu0 0
      %628 = vmatprep.subr.bf16.mxu0 0
      %629 = vmatpush1.bf16.msra.mxu0 0
      %630 = vmatprep.subr.bf16.mxu0 0
      %631 = vmatpush1.bf16.msra.mxu0 0
      %632 = vmatprep.subr.bf16.mxu0 0
      %633 = vmatpush1.bf16.msra.mxu0 0
      %634 = vmatprep.subr.bf16.mxu0 0
      %635 = vmatpush1.bf16.msra.mxu0 0
      %636 = vmatprep.mubr.bf16.mxu0 0
      %637 = vmatmul.mubr.bf16.gmra.mrb[0].mxu0 %v597
      %v638 = vpop.f32.mrb[0].mxu0
      %v639 = vadd.f32 0.0, %v638
      %v640 = vpop.f32.mrb[0].mxu0
      %v641 = vadd.f32 0.0, %v640
      %v642 = vpop.f32.mrb[0].mxu0
      %v643 = vpop.f32.mrb[0].mxu0
      %644 = vdwg.mxu0
      %v645 = vlaneseq
      %v646 = vshrl.u32 %v645, 7
      %v647 = vsub.s32 1, %v646
      %v648 = vrot.slane %v492, %v647
      %v649 = vlaneseq
      %v650 = vshrl.u32 %v649, 7
      %v651 = vsub.s32 1, %v650
      %v652 = vrot.slane %v493, %v651
      %v653 = vmul.f32 %v639, %v648
      %v654 = vmul.f32 %v641, %v652
      %v655 = vadd.f32 %v584, %v653
      %v656 = vadd.f32 %v585, %v654
      %657 = vrot.lane.b32.xlu0 %v491, 15
      %v658 = vpop.permute.xlu0 %657
      %659 = vrot.lane.b32.xlu0 %v488, 15
      %v660 = vpop.permute.xlu0 %659
      %vm661 = vcmask 121856
      %v662 = vsel %vm661, %v660, %v658
      %vm663 = vcmask 121856
      %v666 = vsel %vm663, %v658, %v660
      %v668 = vsel %vm523, %v498, 0
      %v670 = vsel %vm527, %v666, 0
      %v673 = vsel %vm527, %v662, 0
      %675 = vmatprep.subr.bf16.mxu0 %v673
      %676 = vmatpush1.bf16.msra.mxu0 %v670
      %677 = vmatprep.subr.bf16.mxu0 0
      %678 = vmatpush1.bf16.msra.mxu0 0
      %679 = vmatprep.subr.bf16.mxu0 0
      %680 = vmatpush1.bf16.msra.mxu0 0
      %681 = vmatprep.subr.bf16.mxu0 0
      %682 = vmatpush1.bf16.msra.mxu0 0
      %683 = vmatprep.subr.bf16.mxu0 0
      %684 = vmatpush1.bf16.msra.mxu0 0
      %685 = vmatprep.subr.bf16.mxu0 0
      %686 = vmatpush1.bf16.msra.mxu0 0
      %687 = vmatprep.subr.bf16.mxu0 0
      %688 = vmatpush1.bf16.msra.mxu0 0
      %689 = vmatprep.subr.bf16.mxu0 0
      %690 = vmatpush1.bf16.msra.mxu0 0
      %691 = vmatprep.subr.bf16.mxu0 0
      %692 = vmatpush1.bf16.msra.mxu0 0
      %693 = vmatprep.subr.bf16.mxu0 0
      %694 = vmatpush1.bf16.msra.mxu0 0
      %695 = vmatprep.subr.bf16.mxu0 0
      %696 = vmatpush1.bf16.msra.mxu0 0
      %697 = vmatprep.subr.bf16.mxu0 0
      %698 = vmatpush1.bf16.msra.mxu0 0
      %699 = vmatprep.subr.bf16.mxu0 0
      %700 = vmatpush1.bf16.msra.mxu0 0
      %701 = vmatprep.subr.bf16.mxu0 0
      %702 = vmatpush1.bf16.msra.mxu0 0
      %703 = vmatprep.subr.bf16.mxu0 0
      %704 = vmatpush1.bf16.msra.mxu0 0
      %705 = vmatprep.subr.bf16.mxu0 0
      %706 = vmatpush1.bf16.msra.mxu0 0
      %707 = vmatprep.mubr.bf16.mxu0 0
      %708 = vmatmul.mubr.bf16.gmra.mrb[0].mxu0 %v668
      %v709 = vpop.f32.mrb[0].mxu0
      %v710 = vadd.f32 0.0, %v709
      %v711 = vpop.f32.mrb[0].mxu0
      %v712 = vadd.f32 0.0, %v711
      %v713 = vpop.f32.mrb[0].mxu0
      %v714 = vpop.f32.mrb[0].mxu0
      %715 = vdwg.mxu0
      %v716 = vlaneseq
      %v717 = vshrl.u32 %v716, 7
      %v718 = vsub.s32 2, %v717
      %v719 = vrot.slane %v492, %v718
      %v720 = vlaneseq
      %v721 = vshrl.u32 %v720, 7
      %v722 = vsub.s32 2, %v721
      %v723 = vrot.slane %v493, %v722
      %v724 = vmul.f32 %v710, %v719
      %v725 = vmul.f32 %v712, %v723
      %v726 = vadd.f32 %v655, %v724
      %v727 = vadd.f32 %v656, %v725
      %728 = vrot.lane.b32.xlu0 %v491, 1
      %v729 = vpop.permute.xlu0 %728
      %730 = vrot.lane.b32.xlu0 %v488, 1
      %v731 = vpop.permute.xlu0 %730
      %vm732 = vcmask 7168
      %v733 = vsel %vm732, %v731, %v729
      %vm734 = vcmask 7168
      %v737 = vsel %vm734, %v729, %v731
      %v739 = vsel %vm523, %v499, 0
      %v741 = vsel %vm527, %v737, 0
      %v744 = vsel %vm527, %v733, 0
      %746 = vmatprep.subr.bf16.mxu0 %v744
      %747 = vmatpush1.bf16.msra.mxu0 %v741
      %748 = vmatprep.subr.bf16.mxu0 0
      %749 = vmatpush1.bf16.msra.mxu0 0
      %750 = vmatprep.subr.bf16.mxu0 0
      %751 = vmatpush1.bf16.msra.mxu0 0
      %752 = vmatprep.subr.bf16.mxu0 0
      %753 = vmatpush1.bf16.msra.mxu0 0
      %754 = vmatprep.subr.bf16.mxu0 0
      %755 = vmatpush1.bf16.msra.mxu0 0
      %756 = vmatprep.subr.bf16.mxu0 0
      %757 = vmatpush1.bf16.msra.mxu0 0
      %758 = vmatprep.subr.bf16.mxu0 0
      %759 = vmatpush1.bf16.msra.mxu0 0
      %760 = vmatprep.subr.bf16.mxu0 0
      %761 = vmatpush1.bf16.msra.mxu0 0
      %762 = vmatprep.subr.bf16.mxu0 0
      %763 = vmatpush1.bf16.msra.mxu0 0
      %764 = vmatprep.subr.bf16.mxu0 0
      %765 = vmatpush1.bf16.msra.mxu0 0
      %766 = vmatprep.subr.bf16.mxu0 0
      %767 = vmatpush1.bf16.msra.mxu0 0
      %768 = vmatprep.subr.bf16.mxu0 0
      %769 = vmatpush1.bf16.msra.mxu0 0
      %770 = vmatprep.subr.bf16.mxu0 0
      %771 = vmatpush1.bf16.msra.mxu0 0
      %772 = vmatprep.subr.bf16.mxu0 0
      %773 = vmatpush1.bf16.msra.mxu0 0
      %774 = vmatprep.subr.bf16.mxu0 0
      %775 = vmatpush1.bf16.msra.mxu0 0
      %776 = vmatprep.subr.bf16.mxu0 0
      %777 = vmatpush1.bf16.msra.mxu0 0
      %778 = vmatprep.mubr.bf16.mxu0 0
      %779 = vmatmul.mubr.bf16.gmra.mrb[0].mxu0 %v739
      %v780 = vpop.f32.mrb[0].mxu0
      %v781 = vadd.f32 0.0, %v780
      %v782 = vpop.f32.mrb[0].mxu0
      %v783 = vadd.f32 0.0, %v782
      %v784 = vpop.f32.mrb[0].mxu0
      %v785 = vpop.f32.mrb[0].mxu0
      %786 = vdwg.mxu0
      %v787 = vlaneseq
      %v788 = vshrl.u32 %v787, 7
      %v789 = vsub.s32 3, %v788
      %v790 = vrot.slane %v492, %v789
      %v791 = vlaneseq
      %v792 = vshrl.u32 %v791, 7
      %v793 = vsub.s32 3, %v792
      %v794 = vrot.slane %v493, %v793
      %v795 = vmul.f32 %v781, %v790
      %v796 = vmul.f32 %v783, %v794
      %v797 = vadd.f32 %v726, %v795
      %v798 = vadd.f32 %v727, %v796
      %v800 = vsel %vm523, %v500, 0
      %v802 = vsel %vm527, %v488, 0
      %v804 = vsel %vm527, %v491, 0
      %806 = vmatprep.subr.bf16.mxu0 %v804
      %807 = vmatpush1.bf16.msra.mxu0 %v802
      %808 = vmatprep.subr.bf16.mxu0 0
      %809 = vmatpush1.bf16.msra.mxu0 0
      %810 = vmatprep.subr.bf16.mxu0 0
      %811 = vmatpush1.bf16.msra.mxu0 0
      %812 = vmatprep.subr.bf16.mxu0 0
      %813 = vmatpush1.bf16.msra.mxu0 0
      %814 = vmatprep.subr.bf16.mxu0 0
      %815 = vmatpush1.bf16.msra.mxu0 0
      %816 = vmatprep.subr.bf16.mxu0 0
      %817 = vmatpush1.bf16.msra.mxu0 0
      %818 = vmatprep.subr.bf16.mxu0 0
      %819 = vmatpush1.bf16.msra.mxu0 0
      %820 = vmatprep.subr.bf16.mxu0 0
      %821 = vmatpush1.bf16.msra.mxu0 0
      %822 = vmatprep.subr.bf16.mxu0 0
      %823 = vmatpush1.bf16.msra.mxu0 0
      %824 = vmatprep.subr.bf16.mxu0 0
      %825 = vmatpush1.bf16.msra.mxu0 0
      %826 = vmatprep.subr.bf16.mxu0 0
      %827 = vmatpush1.bf16.msra.mxu0 0
      %828 = vmatprep.subr.bf16.mxu0 0
      %829 = vmatpush1.bf16.msra.mxu0 0
      %830 = vmatprep.subr.bf16.mxu0 0
      %831 = vmatpush1.bf16.msra.mxu0 0
      %832 = vmatprep.subr.bf16.mxu0 0
      %833 = vmatpush1.bf16.msra.mxu0 0
      %834 = vmatprep.subr.bf16.mxu0 0
      %835 = vmatpush1.bf16.msra.mxu0 0
      %836 = vmatprep.subr.bf16.mxu0 0
      %837 = vmatpush1.bf16.msra.mxu0 0
      %838 = vmatprep.mubr.bf16.mxu0 0
      %839 = vmatmul.mubr.bf16.gmra.mrb[0].mxu0 %v800
      %v840 = vpop.f32.mrb[0].mxu0
      %v841 = vadd.f32 0.0, %v840
      %v842 = vpop.f32.mrb[0].mxu0
      %v843 = vadd.f32 0.0, %v842
      %v844 = vpop.f32.mrb[0].mxu0
      %v845 = vpop.f32.mrb[0].mxu0
      %846 = vdwg.mxu0
      %v847 = vadd.f32 %v797, %v841
      %v848 = vadd.f32 %v798, %v843
      %849 = vrot.lane.b32.xlu0 %v488, 127
      %v850 = vpop.permute.xlu0 %849
      %851 = vrot.lane.b32.xlu0 %v491, 127
      %v852 = vpop.permute.xlu0 %851
      %vm853 = vcmask 1039360
      %v854 = vsel %vm853, %v850, %v852
      %vm855 = vcmask 1039360
      %v858 = vsel %vm855, %v852, %v850
      %v860 = vsel %vm523, %v501, 0
      %v863 = vsel %vm527, %v854, 0
      %v865 = vsel %vm527, %v858, 0
      %867 = vmatprep.subr.bf16.mxu0 %v865
      %868 = vmatpush1.bf16.msra.mxu0 %v863
      %869 = vmatprep.subr.bf16.mxu0 0
      %870 = vmatpush1.bf16.msra.mxu0 0
      %871 = vmatprep.subr.bf16.mxu0 0
      %872 = vmatpush1.bf16.msra.mxu0 0
      %873 = vmatprep.subr.bf16.mxu0 0
      %874 = vmatpush1.bf16.msra.mxu0 0
      %875 = vmatprep.subr.bf16.mxu0 0
      %876 = vmatpush1.bf16.msra.mxu0 0
      %877 = vmatprep.subr.bf16.mxu0 0
      %878 = vmatpush1.bf16.msra.mxu0 0
      %879 = vmatprep.subr.bf16.mxu0 0
      %880 = vmatpush1.bf16.msra.mxu0 0
      %881 = vmatprep.subr.bf16.mxu0 0
      %882 = vmatpush1.bf16.msra.mxu0 0
      %883 = vmatprep.subr.bf16.mxu0 0
      %884 = vmatpush1.bf16.msra.mxu0 0
      %885 = vmatprep.subr.bf16.mxu0 0
      %886 = vmatpush1.bf16.msra.mxu0 0
      %887 = vmatprep.subr.bf16.mxu0 0
      %888 = vmatpush1.bf16.msra.mxu0 0
      %889 = vmatprep.subr.bf16.mxu0 0
      %890 = vmatpush1.bf16.msra.mxu0 0
      %891 = vmatprep.subr.bf16.mxu0 0
      %892 = vmatpush1.bf16.msra.mxu0 0
      %893 = vmatprep.subr.bf16.mxu0 0
      %894 = vmatpush1.bf16.msra.mxu0 0
      %895 = vmatprep.subr.bf16.mxu0 0
      %896 = vmatpush1.bf16.msra.mxu0 0
      %897 = vmatprep.subr.bf16.mxu0 0
      %898 = vmatpush1.bf16.msra.mxu0 0
      %899 = vmatprep.mubr.bf16.mxu0 0
      %900 = vmatmul.mubr.bf16.gmra.mrb[0].mxu0 %v860
      %v901 = vpop.f32.mrb[0].mxu0
      %v902 = vadd.f32 0.0, %v901
      %v903 = vpop.f32.mrb[0].mxu0
      %v904 = vadd.f32 0.0, %v903
      %v905 = vpop.f32.mrb[0].mxu0
      %v906 = vpop.f32.mrb[0].mxu0
      %907 = vdwg.mxu0
      %v908 = vlaneseq
      %v909 = vshrl.u32 %v908, 7
      %v910 = vsub.s32 5, %v909
      %v911 = vrot.slane %v492, %v910
      %v912 = vlaneseq
      %v913 = vshrl.u32 %v912, 7
      %v914 = vsub.s32 5, %v913
      %v915 = vrot.slane %v493, %v914
      %v916 = vmul.f32 %v902, %v911
      %v917 = vmul.f32 %v904, %v915
      %v918 = vadd.f32 %v847, %v916
      %v919 = vadd.f32 %v848, %v917
      %920 = vrot.lane.b32.xlu0 %v488, 113
      %v921 = vpop.permute.xlu0 %920
      %922 = vrot.lane.b32.xlu0 %v491, 113
      %v923 = vpop.permute.xlu0 %922
      %vm924 = vcmask 924672
      %v925 = vsel %vm924, %v921, %v923
      %vm926 = vcmask 924672
      %v929 = vsel %vm926, %v923, %v921
      %v931 = vsel %vm523, %v502, 0
      %v934 = vsel %vm527, %v925, 0
      %v936 = vsel %vm527, %v929, 0
      %938 = vmatprep.subr.bf16.mxu0 %v936
      %939 = vmatpush1.bf16.msra.mxu0 %v934
      %940 = vmatprep.subr.bf16.mxu0 0
      %941 = vmatpush1.bf16.msra.mxu0 0
      %942 = vmatprep.subr.bf16.mxu0 0
      %943 = vmatpush1.bf16.msra.mxu0 0
      %944 = vmatprep.subr.bf16.mxu0 0
      %945 = vmatpush1.bf16.msra.mxu0 0
      %946 = vmatprep.subr.bf16.mxu0 0
      %947 = vmatpush1.bf16.msra.mxu0 0
      %948 = vmatprep.subr.bf16.mxu0 0
      %949 = vmatpush1.bf16.msra.mxu0 0
      %950 = vmatprep.subr.bf16.mxu0 0
      %951 = vmatpush1.bf16.msra.mxu0 0
      %952 = vmatprep.subr.bf16.mxu0 0
      %953 = vmatpush1.bf16.msra.mxu0 0
      %954 = vmatprep.subr.bf16.mxu0 0
      %955 = vmatpush1.bf16.msra.mxu0 0
      %956 = vmatprep.subr.bf16.mxu0 0
      %957 = vmatpush1.bf16.msra.mxu0 0
      %958 = vmatprep.subr.bf16.mxu0 0
      %959 = vmatpush1.bf16.msra.mxu0 0
      %960 = vmatprep.subr.bf16.mxu0 0
      %961 = vmatpush1.bf16.msra.mxu0 0
      %962 = vmatprep.subr.bf16.mxu0 0
      %963 = vmatpush1.bf16.msra.mxu0 0
      %964 = vmatprep.subr.bf16.mxu0 0
      %965 = vmatpush1.bf16.msra.mxu0 0
      %966 = vmatprep.subr.bf16.mxu0 0
      %967 = vmatpush1.bf16.msra.mxu0 0
      %968 = vmatprep.subr.bf16.mxu0 0
      %969 = vmatpush1.bf16.msra.mxu0 0
      %970 = vmatprep.mubr.bf16.mxu0 0
      %971 = vmatmul.mubr.bf16.gmra.mrb[0].mxu0 %v931
      %v972 = vpop.f32.mrb[0].mxu0
      %v973 = vadd.f32 0.0, %v972
      %v974 = vpop.f32.mrb[0].mxu0
      %v975 = vadd.f32 0.0, %v974
      %v976 = vpop.f32.mrb[0].mxu0
      %v977 = vpop.f32.mrb[0].mxu0
      %978 = vdwg.mxu0
      %v979 = vlaneseq
      %v980 = vshrl.u32 %v979, 7
      %v981 = vsub.s32 6, %v980
      %v982 = vrot.slane %v492, %v981
      %v983 = vlaneseq
      %v984 = vshrl.u32 %v983, 7
      %v985 = vsub.s32 6, %v984
      %v986 = vrot.slane %v493, %v985
      %v987 = vmul.f32 %v973, %v982
      %v988 = vmul.f32 %v975, %v986
      %v989 = vadd.f32 %v918, %v987
      %v990 = vadd.f32 %v919, %v988
      %991 = vrot.lane.b32.xlu0 %v488, 112
      %v992 = vpop.permute.xlu0 %991
      %993 = vrot.lane.b32.xlu0 %v491, 112
      %v994 = vpop.permute.xlu0 %993
      %vm995 = vcmask 916480
      %v996 = vsel %vm995, %v992, %v994
      %vm997 = vcmask 916480
      %v1000 = vsel %vm997, %v994, %v992
      %v1002 = vsel %vm523, %v503, 0
      %v1005 = vsel %vm527, %v996, 0
      %v1007 = vsel %vm527, %v1000, 0
      %1009 = vmatprep.subr.bf16.mxu0 %v1007
      %1010 = vmatpush1.bf16.msra.mxu0 %v1005
      %1011 = vmatprep.subr.bf16.mxu0 0
      %1012 = vmatpush1.bf16.msra.mxu0 0
      %1013 = vmatprep.subr.bf16.mxu0 0
      %1014 = vmatpush1.bf16.msra.mxu0 0
      %1015 = vmatprep.subr.bf16.mxu0 0
      %1016 = vmatpush1.bf16.msra.mxu0 0
      %1017 = vmatprep.subr.bf16.mxu0 0
      %1018 = vmatpush1.bf16.msra.mxu0 0
      %1019 = vmatprep.subr.bf16.mxu0 0
      %1020 = vmatpush1.bf16.msra.mxu0 0
      %1021 = vmatprep.subr.bf16.mxu0 0
      %1022 = vmatpush1.bf16.msra.mxu0 0
      %1023 = vmatprep.subr.bf16.mxu0 0
      %1024 = vmatpush1.bf16.msra.mxu0 0
      %1025 = vmatprep.subr.bf16.mxu0 0
      %1026 = vmatpush1.bf16.msra.mxu0 0
      %1027 = vmatprep.subr.bf16.mxu0 0
      %1028 = vmatpush1.bf16.msra.mxu0 0
      %1029 = vmatprep.subr.bf16.mxu0 0
      %1030 = vmatpush1.bf16.msra.mxu0 0
      %1031 = vmatprep.subr.bf16.mxu0 0
      %1032 = vmatpush1.bf16.msra.mxu0 0
      %1033 = vmatprep.subr.bf16.mxu0 0
      %1034 = vmatpush1.bf16.msra.mxu0 0
      %1035 = vmatprep.subr.bf16.mxu0 0
      %1036 = vmatpush1.bf16.msra.mxu0 0
      %1037 = vmatprep.subr.bf16.mxu0 0
      %1038 = vmatpush1.bf16.msra.mxu0 0
      %1039 = vmatprep.subr.bf16.mxu0 0
      %1040 = vmatpush1.bf16.msra.mxu0 0
      %1041 = vmatprep.mubr.bf16.mxu0 0
      %1042 = vmatmul.mubr.bf16.gmra.mrb[0].mxu0 %v1002
      %v1043 = vpop.f32.mrb[0].mxu0
      %v1044 = vadd.f32 0.0, %v1043
      %v1045 = vpop.f32.mrb[0].mxu0
      %v1046 = vadd.f32 0.0, %v1045
      %v1047 = vpop.f32.mrb[0].mxu0
      %v1048 = vpop.f32.mrb[0].mxu0
      %1049 = vdwg.mxu0
      %v1050 = vlaneseq
      %v1051 = vshrl.u32 %v1050, 7
      %v1052 = vsub.s32 7, %v1051
      %v1053 = vrot.slane %v492, %v1052
      %v1054 = vlaneseq
      %v1055 = vshrl.u32 %v1054, 7
      %v1056 = vsub.s32 7, %v1055
      %v1057 = vrot.slane %v493, %v1056
      %v1058 = vmul.f32 %v1044, %v1053
      %v1059 = vmul.f32 %v1046, %v1057
      %v1060 = vadd.f32 %v989, %v1058
      %v1061 = vadd.f32 %v990, %v1059
      %1062 = vrot.lane.b32.xlu0 %v488, 111
      %v1063 = vpop.permute.xlu0 %1062
      %1064 = vrot.lane.b32.xlu0 %v491, 111
      %v1065 = vpop.permute.xlu0 %1064
      %vm1066 = vcmask 908288
      %v1067 = vsel %vm1066, %v1063, %v1065
      %vm1068 = vcmask 908288
      %v1071 = vsel %vm1068, %v1065, %v1063
      %v1073 = vsel %vm523, %v504, 0
      %v1076 = vsel %vm527, %v1067, 0
      %v1078 = vsel %vm527, %v1071, 0
      %1080 = vmatprep.subr.bf16.mxu0 %v1078
      %1081 = vmatpush1.bf16.msra.mxu0 %v1076
      %1082 = vmatprep.subr.bf16.mxu0 0
      %1083 = vmatpush1.bf16.msra.mxu0 0
      %1084 = vmatprep.subr.bf16.mxu0 0
      %1085 = vmatpush1.bf16.msra.mxu0 0
      %1086 = vmatprep.subr.bf16.mxu0 0
      %1087 = vmatpush1.bf16.msra.mxu0 0
      %1088 = vmatprep.subr.bf16.mxu0 0
      %1089 = vmatpush1.bf16.msra.mxu0 0
      %1090 = vmatprep.subr.bf16.mxu0 0
      %1091 = vmatpush1.bf16.msra.mxu0 0
      %1092 = vmatprep.subr.bf16.mxu0 0
      %1093 = vmatpush1.bf16.msra.mxu0 0
      %1094 = vmatprep.subr.bf16.mxu0 0
      %1095 = vmatpush1.bf16.msra.mxu0 0
      %1096 = vmatprep.subr.bf16.mxu0 0
      %1097 = vmatpush1.bf16.msra.mxu0 0
      %1098 = vmatprep.subr.bf16.mxu0 0
      %1099 = vmatpush1.bf16.msra.mxu0 0
      %1100 = vmatprep.subr.bf16.mxu0 0
      %1101 = vmatpush1.bf16.msra.mxu0 0
      %1102 = vmatprep.subr.bf16.mxu0 0
      %1103 = vmatpush1.bf16.msra.mxu0 0
      %1104 = vmatprep.subr.bf16.mxu0 0
      %1105 = vmatpush1.bf16.msra.mxu0 0
      %1106 = vmatprep.subr.bf16.mxu0 0
      %1107 = vmatpush1.bf16.msra.mxu0 0
      %1108 = vmatprep.subr.bf16.mxu0 0
      %1109 = vmatpush1.bf16.msra.mxu0 0
      %1110 = vmatprep.subr.bf16.mxu0 0
      %1111 = vmatpush1.bf16.msra.mxu0 0
      %1112 = vmatprep.mubr.bf16.mxu0 0
      %1113 = vmatmul.mubr.bf16.gmra.mrb[0].mxu0 %v1073
      %v1114 = vpop.f32.mrb[0].mxu0
      %v1115 = vadd.f32 0.0, %v1114
      %v1116 = vpop.f32.mrb[0].mxu0
      %v1117 = vadd.f32 0.0, %v1116
      %v1118 = vpop.f32.mrb[0].mxu0
      %v1119 = vpop.f32.mrb[0].mxu0
      %1120 = vdwg.mxu0
      %v1121 = vlaneseq
      %v1122 = vshrl.u32 %v1121, 7
      %v1123 = vsub.s32 0, %v1122
      %v1124 = vrot.slane %v494, %v1123
      %v1125 = vlaneseq
      %v1126 = vshrl.u32 %v1125, 7
      %v1127 = vsub.s32 0, %v1126
      %v1128 = vrot.slane %v495, %v1127
      %v1129 = vmul.f32 %v1115, %v1124
      %v1130 = vmul.f32 %v1117, %v1128
      %v1131 = vadd.f32 %v1060, %v1129
      %v1132 = vadd.f32 %v1061, %v1130
      %v1133 = vmax.f32 %v1131, 0.0
      %v1134 = vmax.f32 %v1132, 0.0
      %v1135 = vpack.c.bf16 %v1133, %v1133
      %v1136 = vpack.c.bf16 %v1134, %v1134
      %v1137 = vld [vmem:[%s6] sm:$0x3]
      %v1138 = vld [vmem:[%s6 + $0x2] sm:$0x3]
      %v1139 = vld [vmem:[%s6 + $0x4] sm:$0x3]
      %v1140 = vld [vmem:[%s6 + $0x6] sm:$0x3]
      %v1141 = vld [vmem:[%s6 + $0x8] sm:$0x3]
      %v1142 = vld [vmem:[%s6 + $0xa] sm:$0x3]
      %v1143 = vld [vmem:[%s6 + $0xc] sm:$0x3]
      %v1144 = vld [vmem:[%s6 + $0xe] sm:$0x3]
      %v1145 = vld [vmem:[%s6 + $0x10] sm:$0x3]
      %v1146 = vld [vmem:[%s7] sm:$0xf]
      %1148 = vset.pattern.permute.xlu0 0
      %1149 = vperm.xlu0 %1148, %v1146
      %v1150 = vpop.permute.xlu0 %1149
      %1153 = vrot.lane.b32.xlu0 %v1136, 17
      %v1154 = vpop.permute.xlu0 %1153
      %1156 = vrot.lane.b32.xlu0 %v1135, 17
      %v1157 = vpop.permute.xlu0 %1156
      %v1158 = vsel %vm517, %v1157, %v1154
      %v1161 = vsel %vm519, %v1154, %v1157
      %vm1162 = vcmask 31744
      %v1164 = vsel %vm1162, %v1137, 0
      %v1166 = vsel %vm485, %v1161, 0
      %v1169 = vsel %vm485, %v1158, 0
      %1171 = vmatprep.subr.bf16.mxu0 %v1169
      %1172 = vmatpush1.bf16.msra.mxu0 %v1166
      %1173 = vmatprep.subr.bf16.mxu0 0
      %1174 = vmatpush1.bf16.msra.mxu0 0
      %1175 = vmatprep.subr.bf16.mxu0 0
      %1176 = vmatpush1.bf16.msra.mxu0 0
      %1177 = vmatprep.subr.bf16.mxu0 0
      %1178 = vmatpush1.bf16.msra.mxu0 0
      %1179 = vmatprep.subr.bf16.mxu0 0
      %1180 = vmatpush1.bf16.msra.mxu0 0
      %1181 = vmatprep.subr.bf16.mxu0 0
      %1182 = vmatpush1.bf16.msra.mxu0 0
      %1183 = vmatprep.subr.bf16.mxu0 0
      %1184 = vmatpush1.bf16.msra.mxu0 0
      %1185 = vmatprep.subr.bf16.mxu0 0
      %1186 = vmatpush1.bf16.msra.mxu0 0
      %1187 = vmatprep.subr.bf16.mxu0 0
      %1188 = vmatpush1.bf16.msra.mxu0 0
      %1189 = vmatprep.subr.bf16.mxu0 0
      %1190 = vmatpush1.bf16.msra.mxu0 0
      %1191 = vmatprep.subr.bf16.mxu0 0
      %1192 = vmatpush1.bf16.msra.mxu0 0
      %1193 = vmatprep.subr.bf16.mxu0 0
      %1194 = vmatpush1.bf16.msra.mxu0 0
      %1195 = vmatprep.subr.bf16.mxu0 0
      %1196 = vmatpush1.bf16.msra.mxu0 0
      %1197 = vmatprep.subr.bf16.mxu0 0
      %1198 = vmatpush1.bf16.msra.mxu0 0
      %1199 = vmatprep.subr.bf16.mxu0 0
      %1200 = vmatpush1.bf16.msra.mxu0 0
      %1201 = vmatprep.subr.bf16.mxu0 0
      %1202 = vmatpush1.bf16.msra.mxu0 0
      %1203 = vmatprep.mubr.bf16.mxu0 0
      %1204 = vmatmul.mubr.bf16.gmra.mrb[0].mxu0 %v1164
      %v1205 = vpop.f32.mrb[0].mxu0
      %v1206 = vadd.f32 0.0, %v1205
      %v1207 = vpop.f32.mrb[0].mxu0
      %v1208 = vadd.f32 0.0, %v1207
      %v1209 = vpop.f32.mrb[0].mxu0
      %v1210 = vpop.f32.mrb[0].mxu0
      %1211 = vdwg.mxu0
      %v1212 = vmul.f32 %v1206, %v577
      %v1213 = vmul.f32 %v1208, %v581
      %v1214 = vadd.f32 %v1150, %v1212
      %v1215 = vadd.f32 %v1150, %v1213
      %1216 = vrot.lane.b32.xlu0 %v1136, 16
      %v1217 = vpop.permute.xlu0 %1216
      %1218 = vrot.lane.b32.xlu0 %v1135, 16
      %v1219 = vpop.permute.xlu0 %1218
      %v1220 = vsel %vm590, %v1219, %v1217
      %v1223 = vsel %vm592, %v1217, %v1219
      %v1225 = vsel %vm1162, %v1138, 0
      %v1227 = vsel %vm485, %v1223, 0
      %v1230 = vsel %vm485, %v1220, 0
      %1232 = vmatprep.subr.bf16.mxu0 %v1230
      %1233 = vmatpush1.bf16.msra.mxu0 %v1227
      %1234 = vmatprep.subr.bf16.mxu0 0
      %1235 = vmatpush1.bf16.msra.mxu0 0
      %1236 = vmatprep.subr.bf16.mxu0 0
      %1237 = vmatpush1.bf16.msra.mxu0 0
      %1238 = vmatprep.subr.bf16.mxu0 0
      %1239 = vmatpush1.bf16.msra.mxu0 0
      %1240 = vmatprep.subr.bf16.mxu0 0
      %1241 = vmatpush1.bf16.msra.mxu0 0
      %1242 = vmatprep.subr.bf16.mxu0 0
      %1243 = vmatpush1.bf16.msra.mxu0 0
      %1244 = vmatprep.subr.bf16.mxu0 0
      %1245 = vmatpush1.bf16.msra.mxu0 0
      %1246 = vmatprep.subr.bf16.mxu0 0
      %1247 = vmatpush1.bf16.msra.mxu0 0
      %1248 = vmatprep.subr.bf16.mxu0 0
      %1249 = vmatpush1.bf16.msra.mxu0 0
      %1250 = vmatprep.subr.bf16.mxu0 0
      %1251 = vmatpush1.bf16.msra.mxu0 0
      %1252 = vmatprep.subr.bf16.mxu0 0
      %1253 = vmatpush1.bf16.msra.mxu0 0
      %1254 = vmatprep.subr.bf16.mxu0 0
      %1255 = vmatpush1.bf16.msra.mxu0 0
      %1256 = vmatprep.subr.bf16.mxu0 0
      %1257 = vmatpush1.bf16.msra.mxu0 0
      %1258 = vmatprep.subr.bf16.mxu0 0
      %1259 = vmatpush1.bf16.msra.mxu0 0
      %1260 = vmatprep.subr.bf16.mxu0 0
      %1261 = vmatpush1.bf16.msra.mxu0 0
      %1262 = vmatprep.subr.bf16.mxu0 0
      %1263 = vmatpush1.bf16.msra.mxu0 0
      %1264 = vmatprep.mubr.bf16.mxu0 0
      %1265 = vmatmul.mubr.bf16.gmra.mrb[0].mxu0 %v1225
      %v1266 = vpop.f32.mrb[0].mxu0
      %v1267 = vadd.f32 0.0, %v1266
      %v1268 = vpop.f32.mrb[0].mxu0
      %v1269 = vadd.f32 0.0, %v1268
      %v1270 = vpop.f32.mrb[0].mxu0
      %v1271 = vpop.f32.mrb[0].mxu0
      %1272 = vdwg.mxu0
      %v1273 = vmul.f32 %v1267, %v648
      %v1274 = vmul.f32 %v1269, %v652
      %v1275 = vadd.f32 %v1214, %v1273
      %v1276 = vadd.f32 %v1215, %v1274
      %1277 = vrot.lane.b32.xlu0 %v1136, 15
      %v1278 = vpop.permute.xlu0 %1277
      %1279 = vrot.lane.b32.xlu0 %v1135, 15
      %v1280 = vpop.permute.xlu0 %1279
      %v1281 = vsel %vm661, %v1280, %v1278
      %v1284 = vsel %vm663, %v1278, %v1280
      %v1286 = vsel %vm1162, %v1139, 0
      %v1288 = vsel %vm485, %v1284, 0
      %v1291 = vsel %vm485, %v1281, 0
      %1293 = vmatprep.subr.bf16.mxu0 %v1291
      %1294 = vmatpush1.bf16.msra.mxu0 %v1288
      %1295 = vmatprep.subr.bf16.mxu0 0
      %1296 = vmatpush1.bf16.msra.mxu0 0
      %1297 = vmatprep.subr.bf16.mxu0 0
      %1298 = vmatpush1.bf16.msra.mxu0 0
      %1299 = vmatprep.subr.bf16.mxu0 0
      %1300 = vmatpush1.bf16.msra.mxu0 0
      %1301 = vmatprep.subr.bf16.mxu0 0
      %1302 = vmatpush1.bf16.msra.mxu0 0
      %1303 = vmatprep.subr.bf16.mxu0 0
      %1304 = vmatpush1.bf16.msra.mxu0 0
      %1305 = vmatprep.subr.bf16.mxu0 0
      %1306 = vmatpush1.bf16.msra.mxu0 0
      %1307 = vmatprep.subr.bf16.mxu0 0
      %1308 = vmatpush1.bf16.msra.mxu0 0
      %1309 = vmatprep.subr.bf16.mxu0 0
      %1310 = vmatpush1.bf16.msra.mxu0 0
      %1311 = vmatprep.subr.bf16.mxu0 0
      %1312 = vmatpush1.bf16.msra.mxu0 0
      %1313 = vmatprep.subr.bf16.mxu0 0
      %1314 = vmatpush1.bf16.msra.mxu0 0
      %1315 = vmatprep.subr.bf16.mxu0 0
      %1316 = vmatpush1.bf16.msra.mxu0 0
      %1317 = vmatprep.subr.bf16.mxu0 0
      %1318 = vmatpush1.bf16.msra.mxu0 0
      %1319 = vmatprep.subr.bf16.mxu0 0
      %1320 = vmatpush1.bf16.msra.mxu0 0
      %1321 = vmatprep.subr.bf16.mxu0 0
      %1322 = vmatpush1.bf16.msra.mxu0 0
      %1323 = vmatprep.subr.bf16.mxu0 0
      %1324 = vmatpush1.bf16.msra.mxu0 0
      %1325 = vmatprep.mubr.bf16.mxu0 0
      %1326 = vmatmul.mubr.bf16.gmra.mrb[0].mxu0 %v1286
      %v1327 = vpop.f32.mrb[0].mxu0
      %v1328 = vadd.f32 0.0, %v1327
      %v1329 = vpop.f32.mrb[0].mxu0
      %v1330 = vadd.f32 0.0, %v1329
      %v1331 = vpop.f32.mrb[0].mxu0
      %v1332 = vpop.f32.mrb[0].mxu0
      %1333 = vdwg.mxu0
      %v1334 = vmul.f32 %v1328, %v719
      %v1335 = vmul.f32 %v1330, %v723
      %v1336 = vadd.f32 %v1275, %v1334
      %v1337 = vadd.f32 %v1276, %v1335
      %1338 = vrot.lane.b32.xlu0 %v1136, 1
      %v1339 = vpop.permute.xlu0 %1338
      %1340 = vrot.lane.b32.xlu0 %v1135, 1
      %v1341 = vpop.permute.xlu0 %1340
      %v1342 = vsel %vm732, %v1341, %v1339
      %v1345 = vsel %vm734, %v1339, %v1341
      %v1347 = vsel %vm1162, %v1140, 0
      %v1349 = vsel %vm485, %v1345, 0
      %v1352 = vsel %vm485, %v1342, 0
      %1354 = vmatprep.subr.bf16.mxu0 %v1352
      %1355 = vmatpush1.bf16.msra.mxu0 %v1349
      %1356 = vmatprep.subr.bf16.mxu0 0
      %1357 = vmatpush1.bf16.msra.mxu0 0
      %1358 = vmatprep.subr.bf16.mxu0 0
      %1359 = vmatpush1.bf16.msra.mxu0 0
      %1360 = vmatprep.subr.bf16.mxu0 0
      %1361 = vmatpush1.bf16.msra.mxu0 0
      %1362 = vmatprep.subr.bf16.mxu0 0
      %1363 = vmatpush1.bf16.msra.mxu0 0
      %1364 = vmatprep.subr.bf16.mxu0 0
      %1365 = vmatpush1.bf16.msra.mxu0 0
      %1366 = vmatprep.subr.bf16.mxu0 0
      %1367 = vmatpush1.bf16.msra.mxu0 0
      %1368 = vmatprep.subr.bf16.mxu0 0
      %1369 = vmatpush1.bf16.msra.mxu0 0
      %1370 = vmatprep.subr.bf16.mxu0 0
      %1371 = vmatpush1.bf16.msra.mxu0 0
      %1372 = vmatprep.subr.bf16.mxu0 0
      %1373 = vmatpush1.bf16.msra.mxu0 0
      %1374 = vmatprep.subr.bf16.mxu0 0
      %1375 = vmatpush1.bf16.msra.mxu0 0
      %1376 = vmatprep.subr.bf16.mxu0 0
      %1377 = vmatpush1.bf16.msra.mxu0 0
      %1378 = vmatprep.subr.bf16.mxu0 0
      %1379 = vmatpush1.bf16.msra.mxu0 0
      %1380 = vmatprep.subr.bf16.mxu0 0
      %1381 = vmatpush1.bf16.msra.mxu0 0
      %1382 = vmatprep.subr.bf16.mxu0 0
      %1383 = vmatpush1.bf16.msra.mxu0 0
      %1384 = vmatprep.subr.bf16.mxu0 0
      %1385 = vmatpush1.bf16.msra.mxu0 0
      %1386 = vmatprep.mubr.bf16.mxu0 0
      %1387 = vmatmul.mubr.bf16.gmra.mrb[0].mxu0 %v1347
      %v1388 = vpop.f32.mrb[0].mxu0
      %v1389 = vadd.f32 0.0, %v1388
      %v1390 = vpop.f32.mrb[0].mxu0
      %v1391 = vadd.f32 0.0, %v1390
      %v1392 = vpop.f32.mrb[0].mxu0
      %v1393 = vpop.f32.mrb[0].mxu0
      %1394 = vdwg.mxu0
      %v1395 = vmul.f32 %v1389, %v790
      %v1396 = vmul.f32 %v1391, %v794
      %v1397 = vadd.f32 %v1336, %v1395
      %v1398 = vadd.f32 %v1337, %v1396
      %v1400 = vsel %vm1162, %v1141, 0
      %v1403 = vsel %vm485, %v1135, 0
      %v1406 = vsel %vm485, %v1136, 0
      %1408 = vmatprep.subr.bf16.mxu0 %v1406
      %1409 = vmatpush1.bf16.msra.mxu0 %v1403
      %1410 = vmatprep.subr.bf16.mxu0 0
      %1411 = vmatpush1.bf16.msra.mxu0 0
      %1412 = vmatprep.subr.bf16.mxu0 0
      %1413 = vmatpush1.bf16.msra.mxu0 0
      %1414 = vmatprep.subr.bf16.mxu0 0
      %1415 = vmatpush1.bf16.msra.mxu0 0
      %1416 = vmatprep.subr.bf16.mxu0 0
      %1417 = vmatpush1.bf16.msra.mxu0 0
      %1418 = vmatprep.subr.bf16.mxu0 0
      %1419 = vmatpush1.bf16.msra.mxu0 0
      %1420 = vmatprep.subr.bf16.mxu0 0
      %1421 = vmatpush1.bf16.msra.mxu0 0
      %1422 = vmatprep.subr.bf16.mxu0 0
      %1423 = vmatpush1.bf16.msra.mxu0 0
      %1424 = vmatprep.subr.bf16.mxu0 0
      %1425 = vmatpush1.bf16.msra.mxu0 0
      %1426 = vmatprep.subr.bf16.mxu0 0
      %1427 = vmatpush1.bf16.msra.mxu0 0
      %1428 = vmatprep.subr.bf16.mxu0 0
      %1429 = vmatpush1.bf16.msra.mxu0 0
      %1430 = vmatprep.subr.bf16.mxu0 0
      %1431 = vmatpush1.bf16.msra.mxu0 0
      %1432 = vmatprep.subr.bf16.mxu0 0
      %1433 = vmatpush1.bf16.msra.mxu0 0
      %1434 = vmatprep.subr.bf16.mxu0 0
      %1435 = vmatpush1.bf16.msra.mxu0 0
      %1436 = vmatprep.subr.bf16.mxu0 0
      %1437 = vmatpush1.bf16.msra.mxu0 0
      %1438 = vmatprep.subr.bf16.mxu0 0
      %1439 = vmatpush1.bf16.msra.mxu0 0
      %1440 = vmatprep.mubr.bf16.mxu0 0
      %1441 = vmatmul.mubr.bf16.gmra.mrb[0].mxu0 %v1400
      %v1442 = vpop.f32.mrb[0].mxu0
      %v1443 = vadd.f32 0.0, %v1442
      %v1444 = vpop.f32.mrb[0].mxu0
      %v1445 = vadd.f32 0.0, %v1444
      %v1446 = vpop.f32.mrb[0].mxu0
      %v1447 = vpop.f32.mrb[0].mxu0
      %1448 = vdwg.mxu0
      %v1449 = vadd.f32 %v1397, %v1443
      %v1450 = vadd.f32 %v1398, %v1445
      %1451 = vrot.lane.b32.xlu0 %v1135, 127
      %v1452 = vpop.permute.xlu0 %1451
      %1453 = vrot.lane.b32.xlu0 %v1136, 127
      %v1454 = vpop.permute.xlu0 %1453
      %v1455 = vsel %vm853, %v1452, %v1454
      %v1458 = vsel %vm855, %v1454, %v1452
      %v1460 = vsel %vm1162, %v1142, 0
      %v1463 = vsel %vm485, %v1455, 0
      %v1465 = vsel %vm485, %v1458, 0
      %1467 = vmatprep.subr.bf16.mxu0 %v1465
      %1468 = vmatpush1.bf16.msra.mxu0 %v1463
      %1469 = vmatprep.subr.bf16.mxu0 0
      %1470 = vmatpush1.bf16.msra.mxu0 0
      %1471 = vmatprep.subr.bf16.mxu0 0
      %1472 = vmatpush1.bf16.msra.mxu0 0
      %1473 = vmatprep.subr.bf16.mxu0 0
      %1474 = vmatpush1.bf16.msra.mxu0 0
      %1475 = vmatprep.subr.bf16.mxu0 0
      %1476 = vmatpush1.bf16.msra.mxu0 0
      %1477 = vmatprep.subr.bf16.mxu0 0
      %1478 = vmatpush1.bf16.msra.mxu0 0
      %1479 = vmatprep.subr.bf16.mxu0 0
      %1480 = vmatpush1.bf16.msra.mxu0 0
      %1481 = vmatprep.subr.bf16.mxu0 0
      %1482 = vmatpush1.bf16.msra.mxu0 0
      %1483 = vmatprep.subr.bf16.mxu0 0
      %1484 = vmatpush1.bf16.msra.mxu0 0
      %1485 = vmatprep.subr.bf16.mxu0 0
      %1486 = vmatpush1.bf16.msra.mxu0 0
      %1487 = vmatprep.subr.bf16.mxu0 0
      %1488 = vmatpush1.bf16.msra.mxu0 0
      %1489 = vmatprep.subr.bf16.mxu0 0
      %1490 = vmatpush1.bf16.msra.mxu0 0
      %1491 = vmatprep.subr.bf16.mxu0 0
      %1492 = vmatpush1.bf16.msra.mxu0 0
      %1493 = vmatprep.subr.bf16.mxu0 0
      %1494 = vmatpush1.bf16.msra.mxu0 0
      %1495 = vmatprep.subr.bf16.mxu0 0
      %1496 = vmatpush1.bf16.msra.mxu0 0
      %1497 = vmatprep.subr.bf16.mxu0 0
      %1498 = vmatpush1.bf16.msra.mxu0 0
      %1499 = vmatprep.mubr.bf16.mxu0 0
      %1500 = vmatmul.mubr.bf16.gmra.mrb[0].mxu0 %v1460
      %v1501 = vpop.f32.mrb[0].mxu0
      %v1502 = vadd.f32 0.0, %v1501
      %v1503 = vpop.f32.mrb[0].mxu0
      %v1504 = vadd.f32 0.0, %v1503
      %v1505 = vpop.f32.mrb[0].mxu0
      %v1506 = vpop.f32.mrb[0].mxu0
      %1507 = vdwg.mxu0
      %v1508 = vmul.f32 %v1502, %v911
      %v1509 = vmul.f32 %v1504, %v915
      %v1510 = vadd.f32 %v1449, %v1508
      %v1511 = vadd.f32 %v1450, %v1509
      %1512 = vrot.lane.b32.xlu0 %v1135, 113
      %v1513 = vpop.permute.xlu0 %1512
      %1514 = vrot.lane.b32.xlu0 %v1136, 113
      %v1515 = vpop.permute.xlu0 %1514
      %v1516 = vsel %vm924, %v1513, %v1515
      %v1519 = vsel %vm926, %v1515, %v1513
      %v1521 = vsel %vm1162, %v1143, 0
      %v1524 = vsel %vm485, %v1516, 0
      %v1526 = vsel %vm485, %v1519, 0
      %1528 = vmatprep.subr.bf16.mxu0 %v1526
      %1529 = vmatpush1.bf16.msra.mxu0 %v1524
      %1530 = vmatprep.subr.bf16.mxu0 0
      %1531 = vmatpush1.bf16.msra.mxu0 0
      %1532 = vmatprep.subr.bf16.mxu0 0
      %1533 = vmatpush1.bf16.msra.mxu0 0
      %1534 = vmatprep.subr.bf16.mxu0 0
      %1535 = vmatpush1.bf16.msra.mxu0 0
      %1536 = vmatprep.subr.bf16.mxu0 0
      %1537 = vmatpush1.bf16.msra.mxu0 0
      %1538 = vmatprep.subr.bf16.mxu0 0
      %1539 = vmatpush1.bf16.msra.mxu0 0
      %1540 = vmatprep.subr.bf16.mxu0 0
      %1541 = vmatpush1.bf16.msra.mxu0 0
      %1542 = vmatprep.subr.bf16.mxu0 0
      %1543 = vmatpush1.bf16.msra.mxu0 0
      %1544 = vmatprep.subr.bf16.mxu0 0
      %1545 = vmatpush1.bf16.msra.mxu0 0
      %1546 = vmatprep.subr.bf16.mxu0 0
      %1547 = vmatpush1.bf16.msra.mxu0 0
      %1548 = vmatprep.subr.bf16.mxu0 0
      %1549 = vmatpush1.bf16.msra.mxu0 0
      %1550 = vmatprep.subr.bf16.mxu0 0
      %1551 = vmatpush1.bf16.msra.mxu0 0
      %1552 = vmatprep.subr.bf16.mxu0 0
      %1553 = vmatpush1.bf16.msra.mxu0 0
      %1554 = vmatprep.subr.bf16.mxu0 0
      %1555 = vmatpush1.bf16.msra.mxu0 0
      %1556 = vmatprep.subr.bf16.mxu0 0
      %1557 = vmatpush1.bf16.msra.mxu0 0
      %1558 = vmatprep.subr.bf16.mxu0 0
      %1559 = vmatpush1.bf16.msra.mxu0 0
      %1560 = vmatprep.mubr.bf16.mxu0 0
      %1561 = vmatmul.mubr.bf16.gmra.mrb[0].mxu0 %v1521
      %v1562 = vpop.f32.mrb[0].mxu0
      %v1563 = vadd.f32 0.0, %v1562
      %v1564 = vpop.f32.mrb[0].mxu0
      %v1565 = vadd.f32 0.0, %v1564
      %v1566 = vpop.f32.mrb[0].mxu0
      %v1567 = vpop.f32.mrb[0].mxu0
      %1568 = vdwg.mxu0
      %v1569 = vmul.f32 %v1563, %v982
      %v1570 = vmul.f32 %v1565, %v986
      %v1571 = vadd.f32 %v1510, %v1569
      %v1572 = vadd.f32 %v1511, %v1570
      %1573 = vrot.lane.b32.xlu0 %v1135, 112
      %v1574 = vpop.permute.xlu0 %1573
      %1575 = vrot.lane.b32.xlu0 %v1136, 112
      %v1576 = vpop.permute.xlu0 %1575
      %v1577 = vsel %vm995, %v1574, %v1576
      %v1580 = vsel %vm997, %v1576, %v1574
      %v1582 = vsel %vm1162, %v1144, 0
      %v1585 = vsel %vm485, %v1577, 0
      %v1587 = vsel %vm485, %v1580, 0
      %1589 = vmatprep.subr.bf16.mxu0 %v1587
      %1590 = vmatpush1.bf16.msra.mxu0 %v1585
      %1591 = vmatprep.subr.bf16.mxu0 0
      %1592 = vmatpush1.bf16.msra.mxu0 0
      %1593 = vmatprep.subr.bf16.mxu0 0
      %1594 = vmatpush1.bf16.msra.mxu0 0
      %1595 = vmatprep.subr.bf16.mxu0 0
      %1596 = vmatpush1.bf16.msra.mxu0 0
      %1597 = vmatprep.subr.bf16.mxu0 0
      %1598 = vmatpush1.bf16.msra.mxu0 0
      %1599 = vmatprep.subr.bf16.mxu0 0
      %1600 = vmatpush1.bf16.msra.mxu0 0
      %1601 = vmatprep.subr.bf16.mxu0 0
      %1602 = vmatpush1.bf16.msra.mxu0 0
      %1603 = vmatprep.subr.bf16.mxu0 0
      %1604 = vmatpush1.bf16.msra.mxu0 0
      %1605 = vmatprep.subr.bf16.mxu0 0
      %1606 = vmatpush1.bf16.msra.mxu0 0
      %1607 = vmatprep.subr.bf16.mxu0 0
      %1608 = vmatpush1.bf16.msra.mxu0 0
      %1609 = vmatprep.subr.bf16.mxu0 0
      %1610 = vmatpush1.bf16.msra.mxu0 0
      %1611 = vmatprep.subr.bf16.mxu0 0
      %1612 = vmatpush1.bf16.msra.mxu0 0
      %1613 = vmatprep.subr.bf16.mxu0 0
      %1614 = vmatpush1.bf16.msra.mxu0 0
      %1615 = vmatprep.subr.bf16.mxu0 0
      %1616 = vmatpush1.bf16.msra.mxu0 0
      %1617 = vmatprep.subr.bf16.mxu0 0
      %1618 = vmatpush1.bf16.msra.mxu0 0
      %1619 = vmatprep.subr.bf16.mxu0 0
      %1620 = vmatpush1.bf16.msra.mxu0 0
      %1621 = vmatprep.mubr.bf16.mxu0 0
      %1622 = vmatmul.mubr.bf16.gmra.mrb[0].mxu0 %v1582
      %v1623 = vpop.f32.mrb[0].mxu0
      %v1624 = vadd.f32 0.0, %v1623
      %v1625 = vpop.f32.mrb[0].mxu0
      %v1626 = vadd.f32 0.0, %v1625
      %v1627 = vpop.f32.mrb[0].mxu0
      %v1628 = vpop.f32.mrb[0].mxu0
      %1629 = vdwg.mxu0
      %v1630 = vmul.f32 %v1624, %v1053
      %v1631 = vmul.f32 %v1626, %v1057
      %v1632 = vadd.f32 %v1571, %v1630
      %v1633 = vadd.f32 %v1572, %v1631
      %1634 = vrot.lane.b32.xlu0 %v1135, 111
      %v1635 = vpop.permute.xlu0 %1634
      %1636 = vrot.lane.b32.xlu0 %v1136, 111
      %v1637 = vpop.permute.xlu0 %1636
      %v1638 = vsel %vm1066, %v1635, %v1637
      %v1641 = vsel %vm1068, %v1637, %v1635
      %v1643 = vsel %vm1162, %v1145, 0
      %v1646 = vsel %vm485, %v1638, 0
      %v1648 = vsel %vm485, %v1641, 0
      %1650 = vmatprep.subr.bf16.mxu0 %v1648
      %1651 = vmatpush1.bf16.msra.mxu0 %v1646
      %1652 = vmatprep.subr.bf16.mxu0 0
      %1653 = vmatpush1.bf16.msra.mxu0 0
      %1654 = vmatprep.subr.bf16.mxu0 0
      %1655 = vmatpush1.bf16.msra.mxu0 0
      %1656 = vmatprep.subr.bf16.mxu0 0
      %1657 = vmatpush1.bf16.msra.mxu0 0
      %1658 = vmatprep.subr.bf16.mxu0 0
      %1659 = vmatpush1.bf16.msra.mxu0 0
      %1660 = vmatprep.subr.bf16.mxu0 0
      %1661 = vmatpush1.bf16.msra.mxu0 0
      %1662 = vmatprep.subr.bf16.mxu0 0
      %1663 = vmatpush1.bf16.msra.mxu0 0
      %1664 = vmatprep.subr.bf16.mxu0 0
      %1665 = vmatpush1.bf16.msra.mxu0 0
      %1666 = vmatprep.subr.bf16.mxu0 0
      %1667 = vmatpush1.bf16.msra.mxu0 0
      %1668 = vmatprep.subr.bf16.mxu0 0
      %1669 = vmatpush1.bf16.msra.mxu0 0
      %1670 = vmatprep.subr.bf16.mxu0 0
      %1671 = vmatpush1.bf16.msra.mxu0 0
      %1672 = vmatprep.subr.bf16.mxu0 0
      %1673 = vmatpush1.bf16.msra.mxu0 0
      %1674 = vmatprep.subr.bf16.mxu0 0
      %1675 = vmatpush1.bf16.msra.mxu0 0
      %1676 = vmatprep.subr.bf16.mxu0 0
      %1677 = vmatpush1.bf16.msra.mxu0 0
      %1678 = vmatprep.subr.bf16.mxu0 0
      %1679 = vmatpush1.bf16.msra.mxu0 0
      %1680 = vmatprep.subr.bf16.mxu0 0
      %1681 = vmatpush1.bf16.msra.mxu0 0
      %1682 = vmatprep.mubr.bf16.mxu0 0
      %1683 = vmatmul.mubr.bf16.gmra.mrb[0].mxu0 %v1643
      %v1684 = vpop.f32.mrb[0].mxu0
      %v1685 = vadd.f32 0.0, %v1684
      %v1686 = vpop.f32.mrb[0].mxu0
      %v1687 = vadd.f32 0.0, %v1686
      %v1688 = vpop.f32.mrb[0].mxu0
      %v1689 = vpop.f32.mrb[0].mxu0
      %1690 = vdwg.mxu0
      %v1691 = vmul.f32 %v1685, %v1124
      %v1692 = vmul.f32 %v1687, %v1128
      %v1693 = vadd.f32 %v1632, %v1691
      %v1694 = vadd.f32 %v1633, %v1692
      %v1695 = vmax.f32 %v1693, 0.0
      %v1696 = vmax.f32 %v1694, 0.0
      %v1697 = vpack.c.bf16 %v1695, %v1695
      %v1698 = vpack.c.bf16 %v1696, %v1696
      %v1699 = vld [vmem:[%s8] sm:$0x3]
      %v1700 = vld [vmem:[%s8 + $0x2] sm:$0x3]
      %v1701 = vld [vmem:[%s8 + $0x4] sm:$0x3]
      %v1702 = vld [vmem:[%s8 + $0x6] sm:$0x3]
      %v1703 = vld [vmem:[%s8 + $0x8] sm:$0x3]
      %v1704 = vld [vmem:[%s8 + $0xa] sm:$0x3]
      %v1705 = vld [vmem:[%s8 + $0xc] sm:$0x3]
      %v1706 = vld [vmem:[%s8 + $0xe] sm:$0x3]
      %v1707 = vld [vmem:[%s8 + $0x10] sm:$0x3]
      %v1708 = vld [vmem:[%s9] sm:$0xf]
      %1710 = vset.pattern.permute.xlu0 0
      %1711 = vperm.xlu0 %1710, %v1708
      %v1712 = vpop.permute.xlu0 %1711
      %1715 = vrot.lane.b32.xlu0 %v1698, 17
      %v1716 = vpop.permute.xlu0 %1715
      %1718 = vrot.lane.b32.xlu0 %v1697, 17
      %v1719 = vpop.permute.xlu0 %1718
      %v1720 = vsel %vm517, %v1719, %v1716
      %v1723 = vsel %vm519, %v1716, %v1719
      %v1725 = vsel %vm1162, %v1699, 0
      %v1727 = vsel %vm485, %v1723, 0
      %v1730 = vsel %vm485, %v1720, 0
      %1732 = vmatprep.subr.bf16.mxu0 %v1730
      %1733 = vmatpush1.bf16.msra.mxu0 %v1727
      %1734 = vmatprep.subr.bf16.mxu0 0
      %1735 = vmatpush1.bf16.msra.mxu0 0
      %1736 = vmatprep.subr.bf16.mxu0 0
      %1737 = vmatpush1.bf16.msra.mxu0 0
      %1738 = vmatprep.subr.bf16.mxu0 0
      %1739 = vmatpush1.bf16.msra.mxu0 0
      %1740 = vmatprep.subr.bf16.mxu0 0
      %1741 = vmatpush1.bf16.msra.mxu0 0
      %1742 = vmatprep.subr.bf16.mxu0 0
      %1743 = vmatpush1.bf16.msra.mxu0 0
      %1744 = vmatprep.subr.bf16.mxu0 0
      %1745 = vmatpush1.bf16.msra.mxu0 0
      %1746 = vmatprep.subr.bf16.mxu0 0
      %1747 = vmatpush1.bf16.msra.mxu0 0
      %1748 = vmatprep.subr.bf16.mxu0 0
      %1749 = vmatpush1.bf16.msra.mxu0 0
      %1750 = vmatprep.subr.bf16.mxu0 0
      %1751 = vmatpush1.bf16.msra.mxu0 0
      %1752 = vmatprep.subr.bf16.mxu0 0
      %1753 = vmatpush1.bf16.msra.mxu0 0
      %1754 = vmatprep.subr.bf16.mxu0 0
      %1755 = vmatpush1.bf16.msra.mxu0 0
      %1756 = vmatprep.subr.bf16.mxu0 0
      %1757 = vmatpush1.bf16.msra.mxu0 0
      %1758 = vmatprep.subr.bf16.mxu0 0
      %1759 = vmatpush1.bf16.msra.mxu0 0
      %1760 = vmatprep.subr.bf16.mxu0 0
      %1761 = vmatpush1.bf16.msra.mxu0 0
      %1762 = vmatprep.subr.bf16.mxu0 0
      %1763 = vmatpush1.bf16.msra.mxu0 0
      %1764 = vmatprep.mubr.bf16.mxu0 0
      %1765 = vmatmul.mubr.bf16.gmra.mrb[0].mxu0 %v1725
      %v1766 = vpop.f32.mrb[0].mxu0
      %v1767 = vadd.f32 0.0, %v1766
      %v1768 = vpop.f32.mrb[0].mxu0
      %v1769 = vadd.f32 0.0, %v1768
      %v1770 = vpop.f32.mrb[0].mxu0
      %v1771 = vpop.f32.mrb[0].mxu0
      %1772 = vdwg.mxu0
      %v1773 = vmul.f32 %v1767, %v577
      %v1774 = vmul.f32 %v1769, %v581
      %v1775 = vadd.f32 %v1712, %v1773
      %v1776 = vadd.f32 %v1712, %v1774
      %1777 = vrot.lane.b32.xlu0 %v1698, 16
      %v1778 = vpop.permute.xlu0 %1777
      %1779 = vrot.lane.b32.xlu0 %v1697, 16
      %v1780 = vpop.permute.xlu0 %1779
      %v1781 = vsel %vm590, %v1780, %v1778
      %v1784 = vsel %vm592, %v1778, %v1780
      %v1786 = vsel %vm1162, %v1700, 0
      %v1788 = vsel %vm485, %v1784, 0
      %v1791 = vsel %vm485, %v1781, 0
      %1793 = vmatprep.subr.bf16.mxu0 %v1791
      %1794 = vmatpush1.bf16.msra.mxu0 %v1788
      %1795 = vmatprep.subr.bf16.mxu0 0
      %1796 = vmatpush1.bf16.msra.mxu0 0
      %1797 = vmatprep.subr.bf16.mxu0 0
      %1798 = vmatpush1.bf16.msra.mxu0 0
      %1799 = vmatprep.subr.bf16.mxu0 0
      %1800 = vmatpush1.bf16.msra.mxu0 0
      %1801 = vmatprep.subr.bf16.mxu0 0
      %1802 = vmatpush1.bf16.msra.mxu0 0
      %1803 = vmatprep.subr.bf16.mxu0 0
      %1804 = vmatpush1.bf16.msra.mxu0 0
      %1805 = vmatprep.subr.bf16.mxu0 0
      %1806 = vmatpush1.bf16.msra.mxu0 0
      %1807 = vmatprep.subr.bf16.mxu0 0
      %1808 = vmatpush1.bf16.msra.mxu0 0
      %1809 = vmatprep.subr.bf16.mxu0 0
      %1810 = vmatpush1.bf16.msra.mxu0 0
      %1811 = vmatprep.subr.bf16.mxu0 0
      %1812 = vmatpush1.bf16.msra.mxu0 0
      %1813 = vmatprep.subr.bf16.mxu0 0
      %1814 = vmatpush1.bf16.msra.mxu0 0
      %1815 = vmatprep.subr.bf16.mxu0 0
      %1816 = vmatpush1.bf16.msra.mxu0 0
      %1817 = vmatprep.subr.bf16.mxu0 0
      %1818 = vmatpush1.bf16.msra.mxu0 0
      %1819 = vmatprep.subr.bf16.mxu0 0
      %1820 = vmatpush1.bf16.msra.mxu0 0
      %1821 = vmatprep.subr.bf16.mxu0 0
      %1822 = vmatpush1.bf16.msra.mxu0 0
      %1823 = vmatprep.subr.bf16.mxu0 0
      %1824 = vmatpush1.bf16.msra.mxu0 0
      %1825 = vmatprep.mubr.bf16.mxu0 0
      %1826 = vmatmul.mubr.bf16.gmra.mrb[0].mxu0 %v1786
      %v1827 = vpop.f32.mrb[0].mxu0
      %v1828 = vadd.f32 0.0, %v1827
      %v1829 = vpop.f32.mrb[0].mxu0
      %v1830 = vadd.f32 0.0, %v1829
      %v1831 = vpop.f32.mrb[0].mxu0
      %v1832 = vpop.f32.mrb[0].mxu0
      %1833 = vdwg.mxu0
      %v1834 = vmul.f32 %v1828, %v648
      %v1835 = vmul.f32 %v1830, %v652
      %v1836 = vadd.f32 %v1775, %v1834
      %v1837 = vadd.f32 %v1776, %v1835
      %1838 = vrot.lane.b32.xlu0 %v1698, 15
      %v1839 = vpop.permute.xlu0 %1838
      %1840 = vrot.lane.b32.xlu0 %v1697, 15
      %v1841 = vpop.permute.xlu0 %1840
      %v1842 = vsel %vm661, %v1841, %v1839
      %v1845 = vsel %vm663, %v1839, %v1841
      %v1847 = vsel %vm1162, %v1701, 0
      %v1849 = vsel %vm485, %v1845, 0
      %v1852 = vsel %vm485, %v1842, 0
      %1854 = vmatprep.subr.bf16.mxu0 %v1852
      %1855 = vmatpush1.bf16.msra.mxu0 %v1849
      %1856 = vmatprep.subr.bf16.mxu0 0
      %1857 = vmatpush1.bf16.msra.mxu0 0
      %1858 = vmatprep.subr.bf16.mxu0 0
      %1859 = vmatpush1.bf16.msra.mxu0 0
      %1860 = vmatprep.subr.bf16.mxu0 0
      %1861 = vmatpush1.bf16.msra.mxu0 0
      %1862 = vmatprep.subr.bf16.mxu0 0
      %1863 = vmatpush1.bf16.msra.mxu0 0
      %1864 = vmatprep.subr.bf16.mxu0 0
      %1865 = vmatpush1.bf16.msra.mxu0 0
      %1866 = vmatprep.subr.bf16.mxu0 0
      %1867 = vmatpush1.bf16.msra.mxu0 0
      %1868 = vmatprep.subr.bf16.mxu0 0
      %1869 = vmatpush1.bf16.msra.mxu0 0
      %1870 = vmatprep.subr.bf16.mxu0 0
      %1871 = vmatpush1.bf16.msra.mxu0 0
      %1872 = vmatprep.subr.bf16.mxu0 0
      %1873 = vmatpush1.bf16.msra.mxu0 0
      %1874 = vmatprep.subr.bf16.mxu0 0
      %1875 = vmatpush1.bf16.msra.mxu0 0
      %1876 = vmatprep.subr.bf16.mxu0 0
      %1877 = vmatpush1.bf16.msra.mxu0 0
      %1878 = vmatprep.subr.bf16.mxu0 0
      %1879 = vmatpush1.bf16.msra.mxu0 0
      %1880 = vmatprep.subr.bf16.mxu0 0
      %1881 = vmatpush1.bf16.msra.mxu0 0
      %1882 = vmatprep.subr.bf16.mxu0 0
      %1883 = vmatpush1.bf16.msra.mxu0 0
      %1884 = vmatprep.subr.bf16.mxu0 0
      %1885 = vmatpush1.bf16.msra.mxu0 0
      %1886 = vmatprep.mubr.bf16.mxu0 0
      %1887 = vmatmul.mubr.bf16.gmra.mrb[0].mxu0 %v1847
      %v1888 = vpop.f32.mrb[0].mxu0
      %v1889 = vadd.f32 0.0, %v1888
      %v1890 = vpop.f32.mrb[0].mxu0
      %v1891 = vadd.f32 0.0, %v1890
      %v1892 = vpop.f32.mrb[0].mxu0
      %v1893 = vpop.f32.mrb[0].mxu0
      %1894 = vdwg.mxu0
      %v1895 = vmul.f32 %v1889, %v719
      %v1896 = vmul.f32 %v1891, %v723
      %v1897 = vadd.f32 %v1836, %v1895
      %v1898 = vadd.f32 %v1837, %v1896
      %1899 = vrot.lane.b32.xlu0 %v1698, 1
      %v1900 = vpop.permute.xlu0 %1899
      %1901 = vrot.lane.b32.xlu0 %v1697, 1
      %v1902 = vpop.permute.xlu0 %1901
      %v1903 = vsel %vm732, %v1902, %v1900
      %v1906 = vsel %vm734, %v1900, %v1902
      %v1908 = vsel %vm1162, %v1702, 0
      %v1910 = vsel %vm485, %v1906, 0
      %v1913 = vsel %vm485, %v1903, 0
      %1915 = vmatprep.subr.bf16.mxu0 %v1913
      %1916 = vmatpush1.bf16.msra.mxu0 %v1910
      %1917 = vmatprep.subr.bf16.mxu0 0
      %1918 = vmatpush1.bf16.msra.mxu0 0
      %1919 = vmatprep.subr.bf16.mxu0 0
      %1920 = vmatpush1.bf16.msra.mxu0 0
      %1921 = vmatprep.subr.bf16.mxu0 0
      %1922 = vmatpush1.bf16.msra.mxu0 0
      %1923 = vmatprep.subr.bf16.mxu0 0
      %1924 = vmatpush1.bf16.msra.mxu0 0
      %1925 = vmatprep.subr.bf16.mxu0 0
      %1926 = vmatpush1.bf16.msra.mxu0 0
      %1927 = vmatprep.subr.bf16.mxu0 0
      %1928 = vmatpush1.bf16.msra.mxu0 0
      %1929 = vmatprep.subr.bf16.mxu0 0
      %1930 = vmatpush1.bf16.msra.mxu0 0
      %1931 = vmatprep.subr.bf16.mxu0 0
      %1932 = vmatpush1.bf16.msra.mxu0 0
      %1933 = vmatprep.subr.bf16.mxu0 0
      %1934 = vmatpush1.bf16.msra.mxu0 0
      %1935 = vmatprep.subr.bf16.mxu0 0
      %1936 = vmatpush1.bf16.msra.mxu0 0
      %1937 = vmatprep.subr.bf16.mxu0 0
      %1938 = vmatpush1.bf16.msra.mxu0 0
      %1939 = vmatprep.subr.bf16.mxu0 0
      %1940 = vmatpush1.bf16.msra.mxu0 0
      %1941 = vmatprep.subr.bf16.mxu0 0
      %1942 = vmatpush1.bf16.msra.mxu0 0
      %1943 = vmatprep.subr.bf16.mxu0 0
      %1944 = vmatpush1.bf16.msra.mxu0 0
      %1945 = vmatprep.subr.bf16.mxu0 0
      %1946 = vmatpush1.bf16.msra.mxu0 0
      %1947 = vmatprep.mubr.bf16.mxu0 0
      %1948 = vmatmul.mubr.bf16.gmra.mrb[0].mxu0 %v1908
      %v1949 = vpop.f32.mrb[0].mxu0
      %v1950 = vadd.f32 0.0, %v1949
      %v1951 = vpop.f32.mrb[0].mxu0
      %v1952 = vadd.f32 0.0, %v1951
      %v1953 = vpop.f32.mrb[0].mxu0
      %v1954 = vpop.f32.mrb[0].mxu0
      %1955 = vdwg.mxu0
      %v1956 = vmul.f32 %v1950, %v790
      %v1957 = vmul.f32 %v1952, %v794
      %v1958 = vadd.f32 %v1897, %v1956
      %v1959 = vadd.f32 %v1898, %v1957
      %v1961 = vsel %vm1162, %v1703, 0
      %v1964 = vsel %vm485, %v1697, 0
      %v1967 = vsel %vm485, %v1698, 0
      %1969 = vmatprep.subr.bf16.mxu0 %v1967
      %1970 = vmatpush1.bf16.msra.mxu0 %v1964
      %1971 = vmatprep.subr.bf16.mxu0 0
      %1972 = vmatpush1.bf16.msra.mxu0 0
      %1973 = vmatprep.subr.bf16.mxu0 0
      %1974 = vmatpush1.bf16.msra.mxu0 0
      %1975 = vmatprep.subr.bf16.mxu0 0
      %1976 = vmatpush1.bf16.msra.mxu0 0
      %1977 = vmatprep.subr.bf16.mxu0 0
      %1978 = vmatpush1.bf16.msra.mxu0 0
      %1979 = vmatprep.subr.bf16.mxu0 0
      %1980 = vmatpush1.bf16.msra.mxu0 0
      %1981 = vmatprep.subr.bf16.mxu0 0
      %1982 = vmatpush1.bf16.msra.mxu0 0
      %1983 = vmatprep.subr.bf16.mxu0 0
      %1984 = vmatpush1.bf16.msra.mxu0 0
      %1985 = vmatprep.subr.bf16.mxu0 0
      %1986 = vmatpush1.bf16.msra.mxu0 0
      %1987 = vmatprep.subr.bf16.mxu0 0
      %1988 = vmatpush1.bf16.msra.mxu0 0
      %1989 = vmatprep.subr.bf16.mxu0 0
      %1990 = vmatpush1.bf16.msra.mxu0 0
      %1991 = vmatprep.subr.bf16.mxu0 0
      %1992 = vmatpush1.bf16.msra.mxu0 0
      %1993 = vmatprep.subr.bf16.mxu0 0
      %1994 = vmatpush1.bf16.msra.mxu0 0
      %1995 = vmatprep.subr.bf16.mxu0 0
      %1996 = vmatpush1.bf16.msra.mxu0 0
      %1997 = vmatprep.subr.bf16.mxu0 0
      %1998 = vmatpush1.bf16.msra.mxu0 0
      %1999 = vmatprep.subr.bf16.mxu0 0
      %2000 = vmatpush1.bf16.msra.mxu0 0
      %2001 = vmatprep.mubr.bf16.mxu0 0
      %2002 = vmatmul.mubr.bf16.gmra.mrb[0].mxu0 %v1961
      %v2003 = vpop.f32.mrb[0].mxu0
      %v2004 = vadd.f32 0.0, %v2003
      %v2005 = vpop.f32.mrb[0].mxu0
      %v2006 = vadd.f32 0.0, %v2005
      %v2007 = vpop.f32.mrb[0].mxu0
      %v2008 = vpop.f32.mrb[0].mxu0
      %2009 = vdwg.mxu0
      %v2010 = vadd.f32 %v1958, %v2004
      %v2011 = vadd.f32 %v1959, %v2006
      %2012 = vrot.lane.b32.xlu0 %v1697, 127
      %v2013 = vpop.permute.xlu0 %2012
      %2014 = vrot.lane.b32.xlu0 %v1698, 127
      %v2015 = vpop.permute.xlu0 %2014
      %v2016 = vsel %vm853, %v2013, %v2015
      %v2019 = vsel %vm855, %v2015, %v2013
      %v2021 = vsel %vm1162, %v1704, 0
      %v2024 = vsel %vm485, %v2016, 0
      %v2026 = vsel %vm485, %v2019, 0
      %2028 = vmatprep.subr.bf16.mxu0 %v2026
      %2029 = vmatpush1.bf16.msra.mxu0 %v2024
      %2030 = vmatprep.subr.bf16.mxu0 0
      %2031 = vmatpush1.bf16.msra.mxu0 0
      %2032 = vmatprep.subr.bf16.mxu0 0
      %2033 = vmatpush1.bf16.msra.mxu0 0
      %2034 = vmatprep.subr.bf16.mxu0 0
      %2035 = vmatpush1.bf16.msra.mxu0 0
      %2036 = vmatprep.subr.bf16.mxu0 0
      %2037 = vmatpush1.bf16.msra.mxu0 0
      %2038 = vmatprep.subr.bf16.mxu0 0
      %2039 = vmatpush1.bf16.msra.mxu0 0
      %2040 = vmatprep.subr.bf16.mxu0 0
      %2041 = vmatpush1.bf16.msra.mxu0 0
      %2042 = vmatprep.subr.bf16.mxu0 0
      %2043 = vmatpush1.bf16.msra.mxu0 0
      %2044 = vmatprep.subr.bf16.mxu0 0
      %2045 = vmatpush1.bf16.msra.mxu0 0
      %2046 = vmatprep.subr.bf16.mxu0 0
      %2047 = vmatpush1.bf16.msra.mxu0 0
      %2048 = vmatprep.subr.bf16.mxu0 0
      %2049 = vmatpush1.bf16.msra.mxu0 0
      %2050 = vmatprep.subr.bf16.mxu0 0
      %2051 = vmatpush1.bf16.msra.mxu0 0
      %2052 = vmatprep.subr.bf16.mxu0 0
      %2053 = vmatpush1.bf16.msra.mxu0 0
      %2054 = vmatprep.subr.bf16.mxu0 0
      %2055 = vmatpush1.bf16.msra.mxu0 0
      %2056 = vmatprep.subr.bf16.mxu0 0
      %2057 = vmatpush1.bf16.msra.mxu0 0
      %2058 = vmatprep.subr.bf16.mxu0 0
      %2059 = vmatpush1.bf16.msra.mxu0 0
      %2060 = vmatprep.mubr.bf16.mxu0 0
      %2061 = vmatmul.mubr.bf16.gmra.mrb[0].mxu0 %v2021
      %v2062 = vpop.f32.mrb[0].mxu0
      %v2063 = vadd.f32 0.0, %v2062
      %v2064 = vpop.f32.mrb[0].mxu0
      %v2065 = vadd.f32 0.0, %v2064
      %v2066 = vpop.f32.mrb[0].mxu0
      %v2067 = vpop.f32.mrb[0].mxu0
      %2068 = vdwg.mxu0
      %v2069 = vmul.f32 %v2063, %v911
      %v2070 = vmul.f32 %v2065, %v915
      %v2071 = vadd.f32 %v2010, %v2069
      %v2072 = vadd.f32 %v2011, %v2070
      %2073 = vrot.lane.b32.xlu0 %v1697, 113
      %v2074 = vpop.permute.xlu0 %2073
      %2075 = vrot.lane.b32.xlu0 %v1698, 113
      %v2076 = vpop.permute.xlu0 %2075
      %v2077 = vsel %vm924, %v2074, %v2076
      %v2080 = vsel %vm926, %v2076, %v2074
      %v2082 = vsel %vm1162, %v1705, 0
      %v2085 = vsel %vm485, %v2077, 0
      %v2087 = vsel %vm485, %v2080, 0
      %2089 = vmatprep.subr.bf16.mxu0 %v2087
      %2090 = vmatpush1.bf16.msra.mxu0 %v2085
      %2091 = vmatprep.subr.bf16.mxu0 0
      %2092 = vmatpush1.bf16.msra.mxu0 0
      %2093 = vmatprep.subr.bf16.mxu0 0
      %2094 = vmatpush1.bf16.msra.mxu0 0
      %2095 = vmatprep.subr.bf16.mxu0 0
      %2096 = vmatpush1.bf16.msra.mxu0 0
      %2097 = vmatprep.subr.bf16.mxu0 0
      %2098 = vmatpush1.bf16.msra.mxu0 0
      %2099 = vmatprep.subr.bf16.mxu0 0
      %2100 = vmatpush1.bf16.msra.mxu0 0
      %2101 = vmatprep.subr.bf16.mxu0 0
      %2102 = vmatpush1.bf16.msra.mxu0 0
      %2103 = vmatprep.subr.bf16.mxu0 0
      %2104 = vmatpush1.bf16.msra.mxu0 0
      %2105 = vmatprep.subr.bf16.mxu0 0
      %2106 = vmatpush1.bf16.msra.mxu0 0
      %2107 = vmatprep.subr.bf16.mxu0 0
      %2108 = vmatpush1.bf16.msra.mxu0 0
      %2109 = vmatprep.subr.bf16.mxu0 0
      %2110 = vmatpush1.bf16.msra.mxu0 0
      %2111 = vmatprep.subr.bf16.mxu0 0
      %2112 = vmatpush1.bf16.msra.mxu0 0
      %2113 = vmatprep.subr.bf16.mxu0 0
      %2114 = vmatpush1.bf16.msra.mxu0 0
      %2115 = vmatprep.subr.bf16.mxu0 0
      %2116 = vmatpush1.bf16.msra.mxu0 0
      %2117 = vmatprep.subr.bf16.mxu0 0
      %2118 = vmatpush1.bf16.msra.mxu0 0
      %2119 = vmatprep.subr.bf16.mxu0 0
      %2120 = vmatpush1.bf16.msra.mxu0 0
      %2121 = vmatprep.mubr.bf16.mxu0 0
      %2122 = vmatmul.mubr.bf16.gmra.mrb[0].mxu0 %v2082
      %v2123 = vpop.f32.mrb[0].mxu0
      %v2124 = vadd.f32 0.0, %v2123
      %v2125 = vpop.f32.mrb[0].mxu0
      %v2126 = vadd.f32 0.0, %v2125
      %v2127 = vpop.f32.mrb[0].mxu0
      %v2128 = vpop.f32.mrb[0].mxu0
      %2129 = vdwg.mxu0
      %v2130 = vmul.f32 %v2124, %v982
      %v2131 = vmul.f32 %v2126, %v986
      %v2132 = vadd.f32 %v2071, %v2130
      %v2133 = vadd.f32 %v2072, %v2131
      %2134 = vrot.lane.b32.xlu0 %v1697, 112
      %v2135 = vpop.permute.xlu0 %2134
      %2136 = vrot.lane.b32.xlu0 %v1698, 112
      %v2137 = vpop.permute.xlu0 %2136
      %v2138 = vsel %vm995, %v2135, %v2137
      %v2141 = vsel %vm997, %v2137, %v2135
      %v2143 = vsel %vm1162, %v1706, 0
      %v2146 = vsel %vm485, %v2138, 0
      %v2148 = vsel %vm485, %v2141, 0
      %2150 = vmatprep.subr.bf16.mxu0 %v2148
      %2151 = vmatpush1.bf16.msra.mxu0 %v2146
      %2152 = vmatprep.subr.bf16.mxu0 0
      %2153 = vmatpush1.bf16.msra.mxu0 0
      %2154 = vmatprep.subr.bf16.mxu0 0
      %2155 = vmatpush1.bf16.msra.mxu0 0
      %2156 = vmatprep.subr.bf16.mxu0 0
      %2157 = vmatpush1.bf16.msra.mxu0 0
      %2158 = vmatprep.subr.bf16.mxu0 0
      %2159 = vmatpush1.bf16.msra.mxu0 0
      %2160 = vmatprep.subr.bf16.mxu0 0
      %2161 = vmatpush1.bf16.msra.mxu0 0
      %2162 = vmatprep.subr.bf16.mxu0 0
      %2163 = vmatpush1.bf16.msra.mxu0 0
      %2164 = vmatprep.subr.bf16.mxu0 0
      %2165 = vmatpush1.bf16.msra.mxu0 0
      %2166 = vmatprep.subr.bf16.mxu0 0
      %2167 = vmatpush1.bf16.msra.mxu0 0
      %2168 = vmatprep.subr.bf16.mxu0 0
      %2169 = vmatpush1.bf16.msra.mxu0 0
      %2170 = vmatprep.subr.bf16.mxu0 0
      %2171 = vmatpush1.bf16.msra.mxu0 0
      %2172 = vmatprep.subr.bf16.mxu0 0
      %2173 = vmatpush1.bf16.msra.mxu0 0
      %2174 = vmatprep.subr.bf16.mxu0 0
      %2175 = vmatpush1.bf16.msra.mxu0 0
      %2176 = vmatprep.subr.bf16.mxu0 0
      %2177 = vmatpush1.bf16.msra.mxu0 0
      %2178 = vmatprep.subr.bf16.mxu0 0
      %2179 = vmatpush1.bf16.msra.mxu0 0
      %2180 = vmatprep.subr.bf16.mxu0 0
      %2181 = vmatpush1.bf16.msra.mxu0 0
      %2182 = vmatprep.mubr.bf16.mxu0 0
      %2183 = vmatmul.mubr.bf16.gmra.mrb[0].mxu0 %v2143
      %v2184 = vpop.f32.mrb[0].mxu0
      %v2185 = vadd.f32 0.0, %v2184
      %v2186 = vpop.f32.mrb[0].mxu0
      %v2187 = vadd.f32 0.0, %v2186
      %v2188 = vpop.f32.mrb[0].mxu0
      %v2189 = vpop.f32.mrb[0].mxu0
      %2190 = vdwg.mxu0
      %v2191 = vmul.f32 %v2185, %v1053
      %v2192 = vmul.f32 %v2187, %v1057
      %v2193 = vadd.f32 %v2132, %v2191
      %v2194 = vadd.f32 %v2133, %v2192
      %2195 = vrot.lane.b32.xlu0 %v1697, 111
      %v2196 = vpop.permute.xlu0 %2195
      %2197 = vrot.lane.b32.xlu0 %v1698, 111
      %v2198 = vpop.permute.xlu0 %2197
      %v2199 = vsel %vm1066, %v2196, %v2198
      %v2202 = vsel %vm1068, %v2198, %v2196
      %v2204 = vsel %vm1162, %v1707, 0
      %v2207 = vsel %vm485, %v2199, 0
      %v2209 = vsel %vm485, %v2202, 0
      %2211 = vmatprep.subr.bf16.mxu0 %v2209
      %2212 = vmatpush1.bf16.msra.mxu0 %v2207
      %2213 = vmatprep.subr.bf16.mxu0 0
      %2214 = vmatpush1.bf16.msra.mxu0 0
      %2215 = vmatprep.subr.bf16.mxu0 0
      %2216 = vmatpush1.bf16.msra.mxu0 0
      %2217 = vmatprep.subr.bf16.mxu0 0
      %2218 = vmatpush1.bf16.msra.mxu0 0
      %2219 = vmatprep.subr.bf16.mxu0 0
      %2220 = vmatpush1.bf16.msra.mxu0 0
      %2221 = vmatprep.subr.bf16.mxu0 0
      %2222 = vmatpush1.bf16.msra.mxu0 0
      %2223 = vmatprep.subr.bf16.mxu0 0
      %2224 = vmatpush1.bf16.msra.mxu0 0
      %2225 = vmatprep.subr.bf16.mxu0 0
      %2226 = vmatpush1.bf16.msra.mxu0 0
      %2227 = vmatprep.subr.bf16.mxu0 0
      %2228 = vmatpush1.bf16.msra.mxu0 0
      %2229 = vmatprep.subr.bf16.mxu0 0
      %2230 = vmatpush1.bf16.msra.mxu0 0
      %2231 = vmatprep.subr.bf16.mxu0 0
      %2232 = vmatpush1.bf16.msra.mxu0 0
      %2233 = vmatprep.subr.bf16.mxu0 0
      %2234 = vmatpush1.bf16.msra.mxu0 0
      %2235 = vmatprep.subr.bf16.mxu0 0
      %2236 = vmatpush1.bf16.msra.mxu0 0
      %2237 = vmatprep.subr.bf16.mxu0 0
      %2238 = vmatpush1.bf16.msra.mxu0 0
      %2239 = vmatprep.subr.bf16.mxu0 0
      %2240 = vmatpush1.bf16.msra.mxu0 0
      %2241 = vmatprep.subr.bf16.mxu0 0
      %2242 = vmatpush1.bf16.msra.mxu0 0
      %2243 = vmatprep.mubr.bf16.mxu0 0
      %2244 = vmatmul.mubr.bf16.gmra.mrb[0].mxu0 %v2204
      %v2245 = vpop.f32.mrb[0].mxu0
      %v2246 = vadd.f32 0.0, %v2245
      %v2247 = vpop.f32.mrb[0].mxu0
      %v2248 = vadd.f32 0.0, %v2247
      %v2249 = vpop.f32.mrb[0].mxu0
      %v2250 = vpop.f32.mrb[0].mxu0
      %2251 = vdwg.mxu0
      %v2252 = vmul.f32 %v2246, %v1124
      %v2253 = vmul.f32 %v2248, %v1128
      %v2254 = vadd.f32 %v2193, %v2252
      %v2255 = vadd.f32 %v2194, %v2253
      %v2256 = vmax.f32 %v2254, 0.0
      %v2257 = vmax.f32 %v2255, 0.0
      %v2260 = vcombine.low %v2256, %v2257
      %2262 = vst [vmem:[%s376] sm:$0xff] %v2260
      %p2263 = scmp.lt.s32.totalorder %s21, 1
      %s2264 = scalar_select %p2263, %s21, 1
      %s2265 = smul.addr %s2264, 2
      %s2266 = smul.addr %s2265, 4
      %s2267 = scalar_lea.vmem %s10, %s2266
      // Predicated region
      $region61: #{_unet_up_fused.1} parent=59 // pred_check
        %p2268 = pneg %p259
      $region62: #{_unet_up_fused.1} parent=59 // pred_check_branch
        %2270 = sbr.rel (%p2268) target = $region64
      $region63: #{_unet_up_fused.1} parent=59 // pred_region
        _
      $region64: #{_unet_up_fused.1} parent=59 // pred_fallthru
        _
    $region60: #{_unet_up_fused.1} parent=5 // pred_fallthru
      _
    %p2271 = scmp.le.s32.totalorder 2, %s16
    // Predicated region
    $region65: #{_unet_up_fused.1} parent=5 // pred_check
      %p2272 = pneg %p2271
    $region66: #{_unet_up_fused.1} parent=5 // pred_check_branch
      %2274 = sbr.rel (%p2272) target = $region68
    $region67: #{_unet_up_fused.1} parent=5 // pred_region
      %s2275 = ssub.s32 %s16, 2
      // Predicated region
      $region69: #{_unet_up_fused.1} parent=67 // pred_check
        %p2276 = pneg %p265
      $region70: #{_unet_up_fused.1} parent=67 // pred_check_branch
        %2278 = sbr.rel (%p2276) target = $region72
      $region71: #{_unet_up_fused.1} parent=67 // pred_region
        %p2279 = scmp.lt.s32.totalorder %s22, 1
        %s2280 = scalar_select %p2279, %s22, 1
        %s2281 = smul.addr %s2280, 2
        %s2282 = smul.addr %s2281, 4
        %s2283 = scalar_lea.vmem %s10, %s2282
      $region72: #{_unet_up_fused.1} parent=67 // pred_fallthru
        _
    $region68: #{_unet_up_fused.1} parent=5 // pred_fallthru
      _
  $region6: #{_unet_up_fused.1} parent=0 // loop_footer
    %s20 = sadd.s32 1, %s16
  $region7: #{_unet_up_fused.1} parent=0 // loop_footer_branch
    %15 = sbr.rel target = $region3
  $region8: #{_unet_up_fused.1} parent=0 // loop_exit
    _

</llo_original>
